<compile_context>
chip_gen: v7x
topology: tpu7x:2x2x1
jax: 0.10.0
libtpu: 0.0.40
codegen_flags: <defaults>
</compile_context>

<pallas_src>
import functools

import jax
import jax.numpy as jnp
from jax import lax
from jax.experimental import pallas as pl
from jax.experimental.pallas import tpu as pltpu


def _linear_attention_kernel(x_ref, mask_ref, wqkv_ref, wout_ref, bout_ref,
                             gamma_ref, beta_ref, o_ref,
                             *, heads, dim_head, scale, eps):
    """One grid step: `bB` batch items, fully resident in VMEM.

    Batch items are packed along the lane (N) axis for the two channel
    projections so the MXU sees a wide N; the per-head attention core,
    k-softmax and GroupNorm stay per batch item.
    """
    bB, C, T = x_ref.shape
    HD = heads * dim_head
    N = bB * T
    mm = jnp.bfloat16                     # MXU dtype, decoupled from I/O dtype

    # ---- pack batch items along the lane axis: (C, bB*T).
    if bB > 1:
        xw = jnp.concatenate([x_ref[b] for b in range(bB)], axis=-1)
    else:
        xw = x_ref[0]

    # ---- to_qkv: Conv1d(dim, 3*HD, 1, bias=False) == channel matmul (bf16 MXU).
    qkv = jnp.dot(wqkv_ref[...].astype(mm), xw.astype(mm),
                  preferred_element_type=jnp.float32)            # (3HD, N) f32
    q = qkv[0:HD, :]
    k = qkv[HD:2 * HD, :]
    v = qkv[2 * HD:3 * HD, :]

    # ---- q: per-head softmax over dim_head (torch dim=-2). Column-wise, so it
    # is safe on the packed (HD, N) slab; q-scale folded into the reciprocal.
    qh = q.reshape(heads, dim_head, N)
    qh = qh - jnp.max(qh, axis=1, keepdims=True)
    qe = jnp.exp(qh)
    inv_q = pl.reciprocal(jnp.sum(qe, axis=1, keepdims=True), approx=True)
    q_sm = (qe * (inv_q * scale)).reshape(HD, N)                 # (HD, N) f32

    mask = mask_ref[...]                                         # (HD, HD) bf16

    # ---- attention core + k-softmax: strictly per batch item (the k-softmax
    # over T and the T-contraction must never mix batch items).
    out_slabs = []
    for b in range(bB):
        lo, hi = b * T, (b + 1) * T
        kb = k[:, lo:hi]
        vb = v[:, lo:hi]
        qb = q_sm[:, lo:hi]

        # k: softmax over T (torch dim=-1), per row.
        ke = jnp.exp(kb - jnp.max(kb, axis=1, keepdims=True))
        inv_k = pl.reciprocal(jnp.sum(ke, axis=1, keepdims=True), approx=True)
        k_sm = ke * inv_k                                        # (HD, T) f32

        # ctxT[e, d] = sum_n v[e, n] * k_sm[d, n]  — contract T directly,
        # no materialized transpose of k_sm.
        ctxT = lax.dot_general(vb.astype(mm), k_sm.astype(mm),
                               dimension_numbers=(((1,), (1,)), ((), ())),
                               preferred_element_type=jnp.float32)  # (HD, HD)
        # Per-head block-diagonal structure via the precomputed bf16 mask.
        ctx_mm = ctxT.astype(mm) * mask
        # out[e, n] = sum_d ctxT[e, d] * q[d, n]
        out_slabs.append(jnp.dot(ctx_mm, qb.astype(mm),
                                 preferred_element_type=jnp.float32))  # (HD, T)

    out_all = out_slabs[0] if bB == 1 else jnp.concatenate(out_slabs, axis=-1)

    # ---- to_out 1x1 conv fused across all packed batch items; the conv bias
    # is folded into the GroupNorm affine below, so `y` is bias-free.
    y = jnp.dot(wout_ref[...].astype(mm), out_all.astype(mm),
                preferred_element_type=jnp.float32)              # (C, N) f32

    # ---- bias + GroupNorm(1, C) as one per-channel affine, per batch item.
    # Single-pass row-partial statistics with the bias folded analytically;
    # variance clamped at 0 to keep rsqrt well-defined.
    # TODO(synk): switch to two-pass / Welford stats for UNet-scale C*T.
    bvec = bout_ref[...].astype(jnp.float32)                     # (C, 1)
    g = gamma_ref[...].astype(jnp.float32)                       # (C, 1)
    bt = beta_ref[...].astype(jnp.float32)                       # (C, 1)
    n_elems = jnp.float32(C * T)
    t_f = jnp.float32(T)
    sum_b = jnp.sum(bvec)
    sum_b2 = jnp.sum(bvec * bvec)
    for b in range(bB):
        yb = y[:, b * T:(b + 1) * T]                             # (C, T) f32
        rowsum = jnp.sum(yb, axis=1, keepdims=True)              # (C, 1)
        rowsq = jnp.sum(yb * yb, axis=1, keepdims=True)          # (C, 1)
        s1 = jnp.sum(rowsum) + t_f * sum_b
        s2 = jnp.sum(rowsq) + 2.0 * jnp.sum(bvec * rowsum) + t_f * sum_b2
        mean = s1 / n_elems
        var = jnp.maximum(s2 / n_elems - mean * mean, 0.0)
        inv_std = lax.rsqrt(var + eps)
        a = g * inv_std                                          # (C, 1)
        c_aff = bt + (bvec - mean) * a                           # (C, 1)
        o_ref[b] = (yb * a + c_aff).astype(o_ref.dtype)


def _physical_vmem_bytes():
    """Generation-aware physical VMEM size, with a conservative fallback."""
    try:
        info = pltpu.get_tpu_info()
        for name in ("vmem_capacity_bytes", "vmem_size_bytes", "vmem_bytes"):
            v = getattr(info, name, None)
            if v:
                return int(v)
    except Exception:
        pass
    return 64 * 1024 * 1024                 # v7x-sized conservative fallback


def _pick_batch_tile(B, C, T, HD):
    """Batch items per grid step, packed along the lane axis.

    Only pack when T is lane-aligned; target N = bB*T >= 256 so the K=C / K=HD
    projections fill the 256-wide MXU, while keeping the packed f32 working
    set small enough that the one-pass kernel still fits a v7x-sized VMEM.
    """
    if T % 128 != 0:
        return 1
    target = max(1, -(-256 // T))           # ceil(256 / T)
    best = 1
    for cand in range(1, min(B, target) + 1):
        if B % cand == 0 and cand * T * (3 * HD + 2 * C) * 4 < 24 * 1024 * 1024:
            best = cand
    return best


def linear_attention_pallas(x, w_qkv, w_out, b_out, gamma, beta,
                            *, heads=4, dim_head=32, eps=1e-5):
    B, C, T = x.shape
    HD = heads * dim_head
    scale = dim_head ** (-0.5)

    # MXU weight operands in bf16 (halves their HBM->VMEM traffic too).
    w_qkv_mm = w_qkv.astype(jnp.bfloat16)
    w_out_mm = w_out.astype(jnp.bfloat16)

    # Precomputed per-head block-diagonal mask, reused across all grid steps.
    hid = jnp.arange(HD, dtype=jnp.int32) // dim_head
    mask = (hid[:, None] == hid[None, :]).astype(jnp.bfloat16)   # (HD, HD)

    # Column vectors so everything in VMEM is >= 2-D; epilogue math is f32.
    b_out2 = b_out.reshape(C, 1).astype(jnp.float32)
    gamma2 = gamma.reshape(C, 1).astype(jnp.float32)
    beta2 = beta.reshape(C, 1).astype(jnp.float32)

    bB = _pick_batch_tile(B, C, T, HD)
    N = bB * T

    kernel = functools.partial(_linear_attention_kernel,
                               heads=heads, dim_head=dim_head,
                               scale=scale, eps=eps)

    # Scoped-VMEM budget from the actual working set, capped generation-aware
    # with ~15% headroom for Mosaic scratch (never claim all of physical VMEM).
    dsz = jnp.dtype(x.dtype).itemsize
    f32, bf16 = 4, 2
    work = (2 * 2 * bB * C * T * dsz                # x / out blocks, double-buffered
            + (3 * HD * N) * f32                    # qkv
            + 2 * (HD * N) * (f32 + bf16)           # q_sm, out_all (+ bf16 MXU copies)
            + (C * N) * f32                         # y
            + HD * HD * (f32 + 2 * bf16)            # ctxT + mask
            + 2 * ((3 * HD * C + C * HD + HD * HD) * bf16 + 3 * C * f32))   # params
    vmem_cap = int(0.85 * _physical_vmem_bytes())
    vmem_limit = int(min(max(2 * work, 32 * 1024 * 1024), vmem_cap))

    # NOTE: on v7x the grid-invariant parameter specs could additionally use
    # pipeline_mode=pl.Buffered(1) to drop their second VMEM buffer.
    return pl.pallas_call(
        kernel,
        out_shape=jax.ShapeDtypeStruct((B, C, T), x.dtype),
        grid_spec=pltpu.PrefetchScalarGridSpec(
            num_scalar_prefetch=0,
            grid=(B // bB,),
            in_specs=[
                pl.BlockSpec((bB, C, T), lambda i: (i, 0, 0)),   # x
                pl.BlockSpec((HD, HD), lambda i: (0, 0)),        # head mask (bf16)
                pl.BlockSpec((3 * HD, C), lambda i: (0, 0)),     # w_qkv (bf16)
                pl.BlockSpec((C, HD), lambda i: (0, 0)),         # w_out (bf16)
                pl.BlockSpec((C, 1), lambda i: (0, 0)),          # b_out
                pl.BlockSpec((C, 1), lambda i: (0, 0)),          # gamma
                pl.BlockSpec((C, 1), lambda i: (0, 0)),          # beta
            ],
            out_specs=pl.BlockSpec((bB, C, T), lambda i: (i, 0, 0)),
        ),
        compiler_params=pltpu.CompilerParams(
            dimension_semantics=("parallel",),
            vmem_limit_bytes=vmem_limit),
    )(x, mask, w_qkv_mm, w_out_mm, b_out2, gamma2, beta2)


def linear_attention_reference(x, w_qkv, w_out, b_out, gamma, beta,
                               *, heads=4, dim_head=32, eps=1e-5):
    """Pure-JAX f32 reference mirroring the PyTorch forward."""
    B, C, T = x.shape
    scale = dim_head ** (-0.5)
    qkv = jnp.einsum('oc,bct->bot', w_qkv, x)
    q, k, v = jnp.split(qkv, 3, axis=1)
    r = lambda a: a.reshape(B, heads, dim_head, T)
    q, k, v = map(r, (q, k, v))
    q = jax.nn.softmax(q, axis=-2) * scale
    k = jax.nn.softmax(k, axis=-1)
    context = jnp.einsum('bhdn,bhen->bhde', k, v)
    out = jnp.einsum('bhde,bhdn->bhen', context, q)
    out = out.reshape(B, heads * dim_head, T)
    y = jnp.einsum('oc,bct->bot', w_out, out) + b_out[None, :, None]
    mean = y.mean(axis=(1, 2), keepdims=True)
    var = y.var(axis=(1, 2), keepdims=True)
    yn = (y - mean) / jnp.sqrt(var + eps)
    return gamma[None, :, None] * yn + beta[None, :, None]


if __name__ == "__main__":
    B, dim, T = 2, 32, 128          # T=128 keeps stores lane-dense
    heads, dim_head = 4, 32
    hidden = heads * dim_head

    key = jax.random.PRNGKey(0)
    kx, k1, k2, k3, k4, k5 = jax.random.split(key, 6)

    x = jax.random.normal(kx, (B, dim, T), dtype=jnp.float32)

    # Parameter shapes follow the PyTorch __init__ (conv1d kernel-size-1
    # weights squeezed to 2-D); deterministic synthetic init.
    w_qkv = 0.1 * jax.random.normal(k1, (hidden * 3, dim), dtype=jnp.float32)
    w_out = 0.1 * jax.random.normal(k2, (dim, hidden), dtype=jnp.float32)
    b_out = 0.1 * jax.random.normal(k3, (dim,), dtype=jnp.float32)
    gamma = 1.0 + 0.1 * jax.random.normal(k4, (dim,), dtype=jnp.float32)
    beta = 0.1 * jax.random.normal(k5, (dim,), dtype=jnp.float32)

    out = linear_attention_pallas(x, w_qkv, w_out, b_out, gamma, beta,
                                  heads=heads, dim_head=dim_head)
    out = jax.block_until_ready(out)

    ref = linear_attention_reference(x, w_qkv, w_out, b_out, gamma, beta,
                                     heads=heads, dim_head=dim_head)
    assert out.shape == (B, dim, T)
    # Tolerance accounts for bf16 MXU operands (vs. the pure-f32 reference) and
    # the approximate EUP reciprocals used for both softmax denominators.
    assert jnp.allclose(out, ref, atol=3e-2, rtol=3e-2), (
        f"max abs err {jnp.max(jnp.abs(out - ref))}")

    print("KERNEL_OK")
</pallas_src>

<mosaic_0001>
module attributes {stable_mosaic.version = 11 : i64} {
  func.func @_linear_attention_kernel(%arg0: i32, %arg1: memref<2x32x128xf32, #tpu.memory_space<vmem>>, %arg2: memref<128x128xbf16, #tpu.memory_space<vmem>>, %arg3: memref<384x32xbf16, #tpu.memory_space<vmem>>, %arg4: memref<32x128xbf16, #tpu.memory_space<vmem>>, %arg5: memref<32x1xf32, #tpu.memory_space<vmem>>, %arg6: memref<32x1xf32, #tpu.memory_space<vmem>>, %arg7: memref<32x1xf32, #tpu.memory_space<vmem>>, %arg8: memref<2x32x128xf32, #tpu.memory_space<vmem>>) attributes {dimension_semantics = [#tpu.dimension_semantics<parallel>], iteration_bounds = array<i64: 1>, scalar_prefetch = 0 : i64, scratch_operands = 0 : i64, tpu.core_type = #tpu.core_type<tc>, window_params = [{transform_indices = @transform_0, window_bounds = array<i64: 2, 32, 128>}, {pipeline_mode = #tpu.pipeline_mode<synchronous>, transform_indices = @transform_1, window_bounds = array<i64: 128, 128>}, {pipeline_mode = #tpu.pipeline_mode<synchronous>, transform_indices = @transform_2, window_bounds = array<i64: 384, 32>}, {pipeline_mode = #tpu.pipeline_mode<synchronous>, transform_indices = @transform_3, window_bounds = array<i64: 32, 128>}, {pipeline_mode = #tpu.pipeline_mode<synchronous>, transform_indices = @transform_4, window_bounds = array<i64: 32, 1>}, {pipeline_mode = #tpu.pipeline_mode<synchronous>, transform_indices = @transform_5, window_bounds = array<i64: 32, 1>}, {pipeline_mode = #tpu.pipeline_mode<synchronous>, transform_indices = @transform_6, window_bounds = array<i64: 32, 1>}, {transform_indices = @transform_7, window_bounds = array<i64: 2, 32, 128>}]} {
    %c0 = arith.constant 0 : index
    %c0_0 = arith.constant 0 : index
    %c0_1 = arith.constant 0 : index
    %0 = vector.load %arg1[%c0, %c0_0, %c0_1] : memref<2x32x128xf32, #tpu.memory_space<vmem>>, vector<1x32x128xf32>
    %1 = vector.shape_cast %0 : vector<1x32x128xf32> to vector<32x128xf32>
    %c1 = arith.constant 1 : index
    %c0_2 = arith.constant 0 : index
    %c0_3 = arith.constant 0 : index
    %2 = vector.load %arg1[%c1, %c0_2, %c0_3] : memref<2x32x128xf32, #tpu.memory_space<vmem>>, vector<1x32x128xf32>
    %3 = vector.shape_cast %2 : vector<1x32x128xf32> to vector<32x128xf32>
    %4 = tpu.concatenate %1, %3 in 1 : vector<32x128xf32>, vector<32x128xf32> -> vector<32x256xf32>
    %c0_4 = arith.constant 0 : index
    %c0_5 = arith.constant 0 : index
    %5 = vector.load %arg3[%c0_4, %c0_5] : memref<384x32xbf16, #tpu.memory_space<vmem>>, vector<384x32xbf16>
    %6 = arith.truncf %4 : vector<32x256xf32> to vector<32x256xbf16>
    %cst = arith.constant dense<0.000000e+00> : vector<384x256xf32>
    %7 = tpu.matmul %5, %6, %cst {dimension_numbers = #tpu.dot_dimension_numbers<[1], [0], [0], [1], [0, 0, 1, 1], [], []>} : vector<384x32xbf16>, vector<32x256xbf16>, vector<384x256xf32> -> vector<384x256xf32>
    %8 = vector.extract_strided_slice %7 {offsets = [0, 0], sizes = [128, 256], strides = [1, 1]} : vector<384x256xf32> to vector<128x256xf32>
    %9 = vector.extract_strided_slice %7 {offsets = [128, 0], sizes = [128, 256], strides = [1, 1]} : vector<384x256xf32> to vector<128x256xf32>
    %10 = vector.extract_strided_slice %7 {offsets = [256, 0], sizes = [128, 256], strides = [1, 1]} : vector<384x256xf32> to vector<128x256xf32>
    %11 = vector.shape_cast %8 : vector<128x256xf32> to vector<4x32x256xf32>
    %cst_6 = arith.constant dense<0xFF800000> : vector<4x256xf32>
    %12 = vector.multi_reduction <maximumf>, %11, %cst_6 [1] : vector<4x32x256xf32> to vector<4x256xf32>
    %13 = vector.shape_cast %12 : vector<4x256xf32> to vector<4x1x256xf32>
    %14 = vector.broadcast %13 : vector<4x1x256xf32> to vector<4x32x256xf32>
    %15 = arith.subf %11, %14 : vector<4x32x256xf32>
    %16 = math.exp %15 : vector<4x32x256xf32>
    %cst_7 = arith.constant dense<0.000000e+00> : vector<4x256xf32>
    %17 = vector.multi_reduction <add>, %16, %cst_7 [1] : vector<4x32x256xf32> to vector<4x256xf32>
    %18 = vector.shape_cast %17 : vector<4x256xf32> to vector<4x1x256xf32>
    %19 = tpu.reciprocal %18 {approx = true} : vector<4x1x256xf32> -> vector<4x1x256xf32>
    %cst_8 = arith.constant 0.176776692 : f32
    %20 = vector.broadcast %cst_8 : f32 to vector<4x1x256xf32>
    %21 = arith.mulf %19, %20 : vector<4x1x256xf32>
    %22 = vector.broadcast %21 : vector<4x1x256xf32> to vector<4x32x256xf32>
    %23 = arith.mulf %16, %22 : vector<4x32x256xf32>
    %24 = vector.shape_cast %23 : vector<4x32x256xf32> to vector<128x256xf32>
    %c0_9 = arith.constant 0 : index
    %c0_10 = arith.constant 0 : index
    %25 = vector.load %arg2[%c0_9, %c0_10] : memref<128x128xbf16, #tpu.memory_space<vmem>>, vector<128x128xbf16>
    %26 = vector.extract_strided_slice %9 {offsets = [0, 0], sizes = [128, 128], strides = [1, 1]} : vector<128x256xf32> to vector<128x128xf32>
    %27 = vector.extract_strided_slice %10 {offsets = [0, 0], sizes = [128, 128], strides = [1, 1]} : vector<128x256xf32> to vector<128x128xf32>
    %28 = vector.extract_strided_slice %24 {offsets = [0, 0], sizes = [128, 128], strides = [1, 1]} : vector<128x256xf32> to vector<128x128xf32>
    %cst_11 = arith.constant dense<0xFF800000> : vector<128xf32>
    %29 = vector.multi_reduction <maximumf>, %26, %cst_11 [1] : vector<128x128xf32> to vector<128xf32>
    %30 = vector.shape_cast %29 : vector<128xf32> to vector<128x1xf32>
    %31 = vector.broadcast %30 : vector<128x1xf32> to vector<128x128xf32>
    %32 = arith.subf %26, %31 : vector<128x128xf32>
    %33 = math.exp %32 : vector<128x128xf32>
    %cst_12 = arith.constant dense<0.000000e+00> : vector<128xf32>
    %34 = vector.multi_reduction <add>, %33, %cst_12 [1] : vector<128x128xf32> to vector<128xf32>
    %35 = vector.shape_cast %34 : vector<128xf32> to vector<128x1xf32>
    %36 = tpu.reciprocal %35 {approx = true} : vector<128x1xf32> -> vector<128x1xf32>
    %37 = vector.broadcast %36 : vector<128x1xf32> to vector<128x128xf32>
    %38 = arith.mulf %33, %37 : vector<128x128xf32>
    %39 = arith.truncf %27 : vector<128x128xf32> to vector<128x128xbf16>
    %40 = arith.truncf %38 : vector<128x128xf32> to vector<128x128xbf16>
    %cst_13 = arith.constant dense<0.000000e+00> : vector<128x128xf32>
    %41 = tpu.matmul %39, %40, %cst_13 {dimension_numbers = #tpu.dot_dimension_numbers<[1], [1], [0], [0], [0, 0, 1, 0], [], []>} : vector<128x128xbf16>, vector<128x128xbf16>, vector<128x128xf32> -> vector<128x128xf32>
    %42 = arith.truncf %41 : vector<128x128xf32> to vector<128x128xbf16>
    %43 = arith.mulf %42, %25 : vector<128x128xbf16>
    %44 = arith.truncf %28 : vector<128x128xf32> to vector<128x128xbf16>
    %cst_14 = arith.constant dense<0.000000e+00> : vector<128x128xf32>
    %45 = tpu.matmul %43, %44, %cst_14 {dimension_numbers = #tpu.dot_dimension_numbers<[1], [0], [0], [1], [0, 0, 1, 1], [], []>} : vector<128x128xbf16>, vector<128x128xbf16>, vector<128x128xf32> -> vector<128x128xf32>
    %46 = vector.extract_strided_slice %9 {offsets = [0, 128], sizes = [128, 128], strides = [1, 1]} : vector<128x256xf32> to vector<128x128xf32>
    %47 = vector.extract_strided_slice %10 {offsets = [0, 128], sizes = [128, 128], strides = [1, 1]} : vector<128x256xf32> to vector<128x128xf32>
    %48 = vector.extract_strided_slice %24 {offsets = [0, 128], sizes = [128, 128], strides = [1, 1]} : vector<128x256xf32> to vector<128x128xf32>
    %cst_15 = arith.constant dense<0xFF800000> : vector<128xf32>
    %49 = vector.multi_reduction <maximumf>, %46, %cst_15 [1] : vector<128x128xf32> to vector<128xf32>
    %50 = vector.shape_cast %49 : vector<128xf32> to vector<128x1xf32>
    %51 = vector.broadcast %50 : vector<128x1xf32> to vector<128x128xf32>
    %52 = arith.subf %46, %51 : vector<128x128xf32>
    %53 = math.exp %52 : vector<128x128xf32>
    %cst_16 = arith.constant dense<0.000000e+00> : vector<128xf32>
    %54 = vector.multi_reduction <add>, %53, %cst_16 [1] : vector<128x128xf32> to vector<128xf32>
    %55 = vector.shape_cast %54 : vector<128xf32> to vector<128x1xf32>
    %56 = tpu.reciprocal %55 {approx = true} : vector<128x1xf32> -> vector<128x1xf32>
    %57 = vector.broadcast %56 : vector<128x1xf32> to vector<128x128xf32>
    %58 = arith.mulf %53, %57 : vector<128x128xf32>
    %59 = arith.truncf %47 : vector<128x128xf32> to vector<128x128xbf16>
    %60 = arith.truncf %58 : vector<128x128xf32> to vector<128x128xbf16>
    %cst_17 = arith.constant dense<0.000000e+00> : vector<128x128xf32>
    %61 = tpu.matmul %59, %60, %cst_17 {dimension_numbers = #tpu.dot_dimension_numbers<[1], [1], [0], [0], [0, 0, 1, 0], [], []>} : vector<128x128xbf16>, vector<128x128xbf16>, vector<128x128xf32> -> vector<128x128xf32>
    %62 = arith.truncf %61 : vector<128x128xf32> to vector<128x128xbf16>
    %63 = arith.mulf %62, %25 : vector<128x128xbf16>
    %64 = arith.truncf %48 : vector<128x128xf32> to vector<128x128xbf16>
    %cst_18 = arith.constant dense<0.000000e+00> : vector<128x128xf32>
    %65 = tpu.matmul %63, %64, %cst_18 {dimension_numbers = #tpu.dot_dimension_numbers<[1], [0], [0], [1], [0, 0, 1, 1], [], []>} : vector<128x128xbf16>, vector<128x128xbf16>, vector<128x128xf32> -> vector<128x128xf32>
    %66 = tpu.concatenate %45, %65 in 1 : vector<128x128xf32>, vector<128x128xf32> -> vector<128x256xf32>
    %c0_19 = arith.constant 0 : index
    %c0_20 = arith.constant 0 : index
    %67 = vector.load %arg4[%c0_19, %c0_20] : memref<32x128xbf16, #tpu.memory_space<vmem>>, vector<32x128xbf16>
    %68 = arith.truncf %66 : vector<128x256xf32> to vector<128x256xbf16>
    %cst_21 = arith.constant dense<0.000000e+00> : vector<32x256xf32>
    %69 = tpu.matmul %67, %68, %cst_21 {dimension_numbers = #tpu.dot_dimension_numbers<[1], [0], [0], [1], [0, 0, 1, 1], [], []>} : vector<32x128xbf16>, vector<128x256xbf16>, vector<32x256xf32> -> vector<32x256xf32>
    %c0_22 = arith.constant 0 : index
    %c0_23 = arith.constant 0 : index
    %70 = vector.load %arg5[%c0_22, %c0_23] : memref<32x1xf32, #tpu.memory_space<vmem>>, vector<32x1xf32>
    %c0_24 = arith.constant 0 : index
    %c0_25 = arith.constant 0 : index
    %71 = vector.load %arg6[%c0_24, %c0_25] : memref<32x1xf32, #tpu.memory_space<vmem>>, vector<32x1xf32>
    %c0_26 = arith.constant 0 : index
    %c0_27 = arith.constant 0 : index
    %72 = vector.load %arg7[%c0_26, %c0_27] : memref<32x1xf32, #tpu.memory_space<vmem>>, vector<32x1xf32>
    %73 = vector.shape_cast %70 : vector<32x1xf32> to vector<1x32x1xf32>
    %cst_28 = arith.constant dense<0.000000e+00> : vector<1xf32>
    %74 = vector.multi_reduction <add>, %73, %cst_28 [1, 2] : vector<1x32x1xf32> to vector<1xf32>
    %75 = vector.shape_cast %74 : vector<1xf32> to vector<1x1x1xf32>
    %76 = vector.extract %75[0, 0, 0] : f32 from vector<1x1x1xf32>
    %77 = arith.mulf %70, %70 : vector<32x1xf32>
    %78 = vector.shape_cast %77 : vector<32x1xf32> to vector<1x32x1xf32>
    %cst_29 = arith.constant dense<0.000000e+00> : vector<1xf32>
    %79 = vector.multi_reduction <add>, %78, %cst_29 [1, 2] : vector<1x32x1xf32> to vector<1xf32>
    %80 = vector.shape_cast %79 : vector<1xf32> to vector<1x1x1xf32>
    %81 = vector.extract %80[0, 0, 0] : f32 from vector<1x1x1xf32>
    %82 = vector.extract_strided_slice %69 {offsets = [0, 0], sizes = [32, 128], strides = [1, 1]} : vector<32x256xf32> to vector<32x128xf32>
    %cst_30 = arith.constant dense<0.000000e+00> : vector<32xf32>
    %83 = vector.multi_reduction <add>, %82, %cst_30 [1] : vector<32x128xf32> to vector<32xf32>
    %84 = vector.shape_cast %83 : vector<32xf32> to vector<32x1xf32>
    %85 = arith.mulf %82, %82 : vector<32x128xf32>
    %cst_31 = arith.constant dense<0.000000e+00> : vector<32xf32>
    %86 = vector.multi_reduction <add>, %85, %cst_31 [1] : vector<32x128xf32> to vector<32xf32>
    %87 = vector.shape_cast %86 : vector<32xf32> to vector<32x1xf32>
    %88 = vector.shape_cast %84 : vector<32x1xf32> to vector<1x32x1xf32>
    %cst_32 = arith.constant dense<0.000000e+00> : vector<1xf32>
    %89 = vector.multi_reduction <add>, %88, %cst_32 [1, 2] : vector<1x32x1xf32> to vector<1xf32>
    %90 = vector.shape_cast %89 : vector<1xf32> to vector<1x1x1xf32>
    %91 = vector.extract %90[0, 0, 0] : f32 from vector<1x1x1xf32>
    %cst_33 = arith.constant 1.280000e+02 : f32
    %92 = arith.mulf %cst_33, %76 : f32
    %93 = arith.addf %91, %92 : f32
    %94 = vector.shape_cast %87 : vector<32x1xf32> to vector<1x32x1xf32>
    %cst_34 = arith.constant dense<0.000000e+00> : vector<1xf32>
    %95 = vector.multi_reduction <add>, %94, %cst_34 [1, 2] : vector<1x32x1xf32> to vector<1xf32>
    %96 = vector.shape_cast %95 : vector<1xf32> to vector<1x1x1xf32>
    %97 = vector.extract %96[0, 0, 0] : f32 from vector<1x1x1xf32>
    %98 = arith.mulf %70, %84 : vector<32x1xf32>
    %99 = vector.shape_cast %98 : vector<32x1xf32> to vector<1x32x1xf32>
    %cst_35 = arith.constant dense<0.000000e+00> : vector<1xf32>
    %100 = vector.multi_reduction <add>, %99, %cst_35 [1, 2] : vector<1x32x1xf32> to vector<1xf32>
    %101 = vector.shape_cast %100 : vector<1xf32> to vector<1x1x1xf32>
    %102 = vector.extract %101[0, 0, 0] : f32 from vector<1x1x1xf32>
    %cst_36 = arith.constant 2.000000e+00 : f32
    %103 = arith.mulf %cst_36, %102 : f32
    %104 = arith.addf %97, %103 : f32
    %cst_37 = arith.constant 1.280000e+02 : f32
    %105 = arith.mulf %cst_37, %81 : f32
    %106 = arith.addf %104, %105 : f32
    %cst_38 = arith.constant 4.096000e+03 : f32
    %107 = arith.divf %93, %cst_38 : f32
    %cst_39 = arith.constant 4.096000e+03 : f32
    %108 = arith.divf %106, %cst_39 : f32
    %109 = arith.mulf %107, %107 : f32
    %110 = arith.subf %108, %109 : f32
    %cst_40 = arith.constant 0.000000e+00 : f32
    %111 = arith.maximumf %110, %cst_40 : f32
    %cst_41 = arith.constant 9.99999974E-6 : f32
    %112 = arith.addf %111, %cst_41 : f32
    %113 = math.rsqrt %112 : f32
    %114 = vector.broadcast %113 : f32 to vector<32x1xf32>
    %115 = arith.mulf %71, %114 : vector<32x1xf32>
    %116 = vector.broadcast %107 : f32 to vector<32x1xf32>
    %117 = arith.subf %70, %116 : vector<32x1xf32>
    %118 = arith.mulf %117, %115 : vector<32x1xf32>
    %119 = arith.addf %72, %118 : vector<32x1xf32>
    %120 = vector.broadcast %115 : vector<32x1xf32> to vector<32x128xf32>
    %121 = arith.mulf %82, %120 : vector<32x128xf32>
    %122 = vector.broadcast %119 : vector<32x1xf32> to vector<32x128xf32>
    %123 = arith.addf %121, %122 : vector<32x128xf32>
    %c0_42 = arith.constant 0 : index
    %c0_43 = arith.constant 0 : index
    %c0_44 = arith.constant 0 : index
    %124 = vector.load %arg8[%c0_42, %c0_43, %c0_44] : memref<2x32x128xf32, #tpu.memory_space<vmem>>, vector<1x32x128xf32>
    %125 = vector.shape_cast %124 : vector<1x32x128xf32> to vector<32x128xf32>
    %126 = vector.shape_cast %123 : vector<32x128xf32> to vector<1x32x128xf32>
    tpu.vector_store %arg8[%c0_42, %c0_43, %c0_44], %126 {strides = array<i32>} : memref<2x32x128xf32, #tpu.memory_space<vmem>>, vector<1x32x128xf32>,
    %127 = vector.extract_strided_slice %69 {offsets = [0, 128], sizes = [32, 128], strides = [1, 1]} : vector<32x256xf32> to vector<32x128xf32>
    %cst_45 = arith.constant dense<0.000000e+00> : vector<32xf32>
    %128 = vector.multi_reduction <add>, %127, %cst_45 [1] : vector<32x128xf32> to vector<32xf32>
    %129 = vector.shape_cast %128 : vector<32xf32> to vector<32x1xf32>
    %130 = arith.mulf %127, %127 : vector<32x128xf32>
    %cst_46 = arith.constant dense<0.000000e+00> : vector<32xf32>
    %131 = vector.multi_reduction <add>, %130, %cst_46 [1] : vector<32x128xf32> to vector<32xf32>
    %132 = vector.shape_cast %131 : vector<32xf32> to vector<32x1xf32>
    %133 = vector.shape_cast %129 : vector<32x1xf32> to vector<1x32x1xf32>
    %cst_47 = arith.constant dense<0.000000e+00> : vector<1xf32>
    %134 = vector.multi_reduction <add>, %133, %cst_47 [1, 2] : vector<1x32x1xf32> to vector<1xf32>
    %135 = vector.shape_cast %134 : vector<1xf32> to vector<1x1x1xf32>
    %136 = vector.extract %135[0, 0, 0] : f32 from vector<1x1x1xf32>
    %cst_48 = arith.constant 1.280000e+02 : f32
    %137 = arith.mulf %cst_48, %76 : f32
    %138 = arith.addf %136, %137 : f32
    %139 = vector.shape_cast %132 : vector<32x1xf32> to vector<1x32x1xf32>
    %cst_49 = arith.constant dense<0.000000e+00> : vector<1xf32>
    %140 = vector.multi_reduction <add>, %139, %cst_49 [1, 2] : vector<1x32x1xf32> to vector<1xf32>
    %141 = vector.shape_cast %140 : vector<1xf32> to vector<1x1x1xf32>
    %142 = vector.extract %141[0, 0, 0] : f32 from vector<1x1x1xf32>
    %143 = arith.mulf %70, %129 : vector<32x1xf32>
    %144 = vector.shape_cast %143 : vector<32x1xf32> to vector<1x32x1xf32>
    %cst_50 = arith.constant dense<0.000000e+00> : vector<1xf32>
    %145 = vector.multi_reduction <add>, %144, %cst_50 [1, 2] : vector<1x32x1xf32> to vector<1xf32>
    %146 = vector.shape_cast %145 : vector<1xf32> to vector<1x1x1xf32>
    %147 = vector.extract %146[0, 0, 0] : f32 from vector<1x1x1xf32>
    %cst_51 = arith.constant 2.000000e+00 : f32
    %148 = arith.mulf %cst_51, %147 : f32
    %149 = arith.addf %142, %148 : f32
    %cst_52 = arith.constant 1.280000e+02 : f32
    %150 = arith.mulf %cst_52, %81 : f32
    %151 = arith.addf %149, %150 : f32
    %cst_53 = arith.constant 4.096000e+03 : f32
    %152 = arith.divf %138, %cst_53 : f32
    %cst_54 = arith.constant 4.096000e+03 : f32
    %153 = arith.divf %151, %cst_54 : f32
    %154 = arith.mulf %152, %152 : f32
    %155 = arith.subf %153, %154 : f32
    %cst_55 = arith.constant 0.000000e+00 : f32
    %156 = arith.maximumf %155, %cst_55 : f32
    %cst_56 = arith.constant 9.99999974E-6 : f32
    %157 = arith.addf %156, %cst_56 : f32
    %158 = math.rsqrt %157 : f32
    %159 = vector.broadcast %158 : f32 to vector<32x1xf32>
    %160 = arith.mulf %71, %159 : vector<32x1xf32>
    %161 = vector.broadcast %152 : f32 to vector<32x1xf32>
    %162 = arith.subf %70, %161 : vector<32x1xf32>
    %163 = arith.mulf %162, %160 : vector<32x1xf32>
    %164 = arith.addf %72, %163 : vector<32x1xf32>
    %165 = vector.broadcast %160 : vector<32x1xf32> to vector<32x128xf32>
    %166 = arith.mulf %127, %165 : vector<32x128xf32>
    %167 = vector.broadcast %164 : vector<32x1xf32> to vector<32x128xf32>
    %168 = arith.addf %166, %167 : vector<32x128xf32>
    %c1_57 = arith.constant 1 : index
    %c0_58 = arith.constant 0 : index
    %c0_59 = arith.constant 0 : index
    %169 = vector.load %arg8[%c1_57, %c0_58, %c0_59] : memref<2x32x128xf32, #tpu.memory_space<vmem>>, vector<1x32x128xf32>
    %170 = vector.shape_cast %169 : vector<1x32x128xf32> to vector<32x128xf32>
    %171 = vector.shape_cast %168 : vector<32x128xf32> to vector<1x32x128xf32>
    tpu.vector_store %arg8[%c1_57, %c0_58, %c0_59], %171 {strides = array<i32>} : memref<2x32x128xf32, #tpu.memory_space<vmem>>, vector<1x32x128xf32>,
    return
  }
  func.func @transform_0(%arg0: i32) -> (i32, i32, i32) {
    %c0_i32 = arith.constant 0 : i32
    %c0_i32_0 = arith.constant 0 : i32
    %c0_i32_1 = arith.constant 0 : i32
    return %arg0, %c0_i32, %c0_i32_0 : i32, i32, i32
  }
  func.func @transform_1(%arg0: i32) -> (i32, i32) {
    %c0_i32 = arith.constant 0 : i32
    %c0_i32_0 = arith.constant 0 : i32
    %c0_i32_1 = arith.constant 0 : i32
    return %c0_i32, %c0_i32_0 : i32, i32
  }
  func.func @transform_2(%arg0: i32) -> (i32, i32) {
    %c0_i32 = arith.constant 0 : i32
    %c0_i32_0 = arith.constant 0 : i32
    %c0_i32_1 = arith.constant 0 : i32
    return %c0_i32, %c0_i32_0 : i32, i32
  }
  func.func @transform_3(%arg0: i32) -> (i32, i32) {
    %c0_i32 = arith.constant 0 : i32
    %c0_i32_0 = arith.constant 0 : i32
    %c0_i32_1 = arith.constant 0 : i32
    return %c0_i32, %c0_i32_0 : i32, i32
  }
  func.func @transform_4(%arg0: i32) -> (i32, i32) {
    %c0_i32 = arith.constant 0 : i32
    %c0_i32_0 = arith.constant 0 : i32
    %c0_i32_1 = arith.constant 0 : i32
    return %c0_i32, %c0_i32_0 : i32, i32
  }
  func.func @transform_5(%arg0: i32) -> (i32, i32) {
    %c0_i32 = arith.constant 0 : i32
    %c0_i32_0 = arith.constant 0 : i32
    %c0_i32_1 = arith.constant 0 : i32
    return %c0_i32, %c0_i32_0 : i32, i32
  }
  func.func @transform_6(%arg0: i32) -> (i32, i32) {
    %c0_i32 = arith.constant 0 : i32
    %c0_i32_0 = arith.constant 0 : i32
    %c0_i32_1 = arith.constant 0 : i32
    return %c0_i32, %c0_i32_0 : i32, i32
  }
  func.func @transform_7(%arg0: i32) -> (i32, i32, i32) {
    %c0_i32 = arith.constant 0 : i32
    %c0_i32_0 = arith.constant 0 : i32
    %c0_i32_1 = arith.constant 0 : i32
    return %arg0, %c0_i32, %c0_i32_0 : i32, i32, i32
  }
}

</mosaic_0001>

<llo_original>
// kernel: tpu_custom_call.1
$region0: #{tpu_custom_call.1}
  #allocation0 [shape = 'u32[]', space=smem, size = 0x4, offset = 0x4, fixed_abs, tag = 'smem constant byte address 0x4 - core index']
  #allocation1 [shape = 'u32[144,128]{1,0:T(1,128)}', space=vmem, size = 0x12000, scoped, tag = 'internal scratch']
  %s0 = inlined_call_operand.vmem [shape: f32[2,32,128], index: 0, kind: input, shape index: {}]
  %s1 = inlined_call_operand.vmem [shape: bf16[128,128], index: 1, kind: input, shape index: {}]
  %s2 = inlined_call_operand.vmem [shape: bf16[384,32], index: 2, kind: input, shape index: {}]
  %s3 = inlined_call_operand.vmem [shape: bf16[32,128], index: 3, kind: input, shape index: {}]
  %s4 = inlined_call_operand.vmem [shape: f32[32,1], index: 4, kind: input, shape index: {}]
  %s5 = inlined_call_operand.vmem [shape: f32[32,1], index: 5, kind: input, shape index: {}]
  %s6 = inlined_call_operand.vmem [shape: f32[32,1], index: 6, kind: input, shape index: {}]
  %s7 = inlined_call_operand.hbm [shape: f32[2,32,128], index: 7, kind: output, shape index: {}]
  %s8 = sld [smem:[#allocation0]]
  $region38: #{tpu_custom_call.1} parent=0
    _
  %s10 = ssub.s32 1, %s8
  %s11 = scalar_select 0, %s10, %s8
  $region1: #{tpu_custom_call.1} parent=0
    #allocation2 [shape = 'u8[32768]{0}', space=vmem, size = 0x8000, scoped, tag = 'output window, operand 0, single buffered']
    #allocation3 [shape = 's32[1]{0}', space=sflag, size = 0x4, scoped, tag = 'scoped memory for tpu_custom_call.1']
    %12 = vsyncpa [#allocation3], 0
    // Predicated region
    $region2: #{tpu_custom_call.1} parent=1 // pred_check
      _
    $region3: #{tpu_custom_call.1} parent=1 // pred_check_branch
      %14 = sbr.rel (0) target = $region5
    $region4: #{tpu_custom_call.1} parent=1 // pred_region
      _
    $region5: #{tpu_custom_call.1} parent=1 // pred_fallthru
      _
    // Predicated region
    $region6: #{tpu_custom_call.1} parent=1 // pred_check
      _
    $region7: #{tpu_custom_call.1} parent=1 // pred_check_branch
      %16 = sbr.rel (0) target = $region9
    $region8: #{tpu_custom_call.1} parent=1 // pred_region
      _
    $region9: #{tpu_custom_call.1} parent=1 // pred_fallthru
      _
    // Predicated region
    $region10: #{tpu_custom_call.1} parent=1 // pred_check
      _
    $region11: #{tpu_custom_call.1} parent=1 // pred_check_branch
      %18 = sbr.rel (0) target = $region13
    $region12: #{tpu_custom_call.1} parent=1 // pred_region
      _
    $region13: #{tpu_custom_call.1} parent=1 // pred_fallthru
      _
    // Predicated region
    $region14: #{tpu_custom_call.1} parent=1 // pred_check
      _
    $region15: #{tpu_custom_call.1} parent=1 // pred_check_branch
      %20 = sbr.rel (0) target = $region17
    $region16: #{tpu_custom_call.1} parent=1 // pred_region
      _
    $region17: #{tpu_custom_call.1} parent=1 // pred_fallthru
      _
    // Predicated region
    $region18: #{tpu_custom_call.1} parent=1 // pred_check
      _
    $region19: #{tpu_custom_call.1} parent=1 // pred_check_branch
      %22 = sbr.rel (0) target = $region21
    $region20: #{tpu_custom_call.1} parent=1 // pred_region
      _
    $region21: #{tpu_custom_call.1} parent=1 // pred_fallthru
      _
    // Predicated region
    $region22: #{tpu_custom_call.1} parent=1 // pred_check
      _
    $region23: #{tpu_custom_call.1} parent=1 // pred_check_branch
      %24 = sbr.rel (0) target = $region25
    $region24: #{tpu_custom_call.1} parent=1 // pred_region
      _
    $region25: #{tpu_custom_call.1} parent=1 // pred_fallthru
      _
    // Predicated region
    $region26: #{tpu_custom_call.1} parent=1 // pred_check
      _
    $region27: #{tpu_custom_call.1} parent=1 // pred_check_branch
      %26 = sbr.rel (0) target = $region29
    $region28: #{tpu_custom_call.1} parent=1 // pred_region
      _
    $region29: #{tpu_custom_call.1} parent=1 // pred_fallthru
      _
    %v28 = vld [vmem:[%s0] sm:$0xff]
    %v29 = vld [vmem:[%s0 + $0x8] sm:$0xff]
    %v30 = vld [vmem:[%s0 + $0x10] sm:$0xff]
    %v31 = vld [vmem:[%s0 + $0x18] sm:$0xff]
    %s32 = scalar_lea.vmem %s0, 32
    %v33 = vld [vmem:[%s32] sm:$0xff]
    %v34 = vld [vmem:[%s32 + $0x8] sm:$0xff]
    %v35 = vld [vmem:[%s32 + $0x10] sm:$0xff]
    %v36 = vld [vmem:[%s32 + $0x18] sm:$0xff]
    %v37 = vld [vmem:[%s2] sm:$0xf]
    %v38 = vld [vmem:[%s2 + $0x4] sm:$0xf]
    %v39 = vld [vmem:[%s2 + $0x8] sm:$0xf]
    %v40 = vld [vmem:[%s2 + $0xc] sm:$0xf]
    %v41 = vld [vmem:[%s2 + $0x10] sm:$0xf]
    %v42 = vld [vmem:[%s2 + $0x14] sm:$0xf]
    %v43 = vld [vmem:[%s2 + $0x18] sm:$0xf]
    %v44 = vld [vmem:[%s2 + $0x1c] sm:$0xf]
    %v45 = vld [vmem:[%s2 + $0x20] sm:$0xf]
    %v46 = vld [vmem:[%s2 + $0x24] sm:$0xf]
    %v47 = vld [vmem:[%s2 + $0x28] sm:$0xf]
    %v48 = vld [vmem:[%s2 + $0x2c] sm:$0xf]
    %v49 = vld [vmem:[%s2 + $0x30] sm:$0xf]
    %v50 = vld [vmem:[%s2 + $0x34] sm:$0xf]
    %v51 = vld [vmem:[%s2 + $0x38] sm:$0xf]
    %v52 = vld [vmem:[%s2 + $0x3c] sm:$0xf]
    %v53 = vld [vmem:[%s2 + $0x40] sm:$0xf]
    %v54 = vld [vmem:[%s2 + $0x44] sm:$0xf]
    %v55 = vld [vmem:[%s2 + $0x48] sm:$0xf]
    %v56 = vld [vmem:[%s2 + $0x4c] sm:$0xf]
    %v57 = vld [vmem:[%s2 + $0x50] sm:$0xf]
    %v58 = vld [vmem:[%s2 + $0x54] sm:$0xf]
    %v59 = vld [vmem:[%s2 + $0x58] sm:$0xf]
    %v60 = vld [vmem:[%s2 + $0x5c] sm:$0xf]
    %v61 = vld [vmem:[%s2 + $0x60] sm:$0xf]
    %v62 = vld [vmem:[%s2 + $0x64] sm:$0xf]
    %v63 = vld [vmem:[%s2 + $0x68] sm:$0xf]
    %v64 = vld [vmem:[%s2 + $0x6c] sm:$0xf]
    %v65 = vld [vmem:[%s2 + $0x70] sm:$0xf]
    %v66 = vld [vmem:[%s2 + $0x74] sm:$0xf]
    %v67 = vld [vmem:[%s2 + $0x78] sm:$0xf]
    %v68 = vld [vmem:[%s2 + $0x7c] sm:$0xf]
    %v69 = vld [vmem:[%s2 + $0x80] sm:$0xf]
    %v70 = vld [vmem:[%s2 + $0x84] sm:$0xf]
    %v71 = vld [vmem:[%s2 + $0x88] sm:$0xf]
    %v72 = vld [vmem:[%s2 + $0x8c] sm:$0xf]
    %v73 = vld [vmem:[%s2 + $0x90] sm:$0xf]
    %v74 = vld [vmem:[%s2 + $0x94] sm:$0xf]
    %v75 = vld [vmem:[%s2 + $0x98] sm:$0xf]
    %v76 = vld [vmem:[%s2 + $0x9c] sm:$0xf]
    %v77 = vld [vmem:[%s2 + $0xa0] sm:$0xf]
    %v78 = vld [vmem:[%s2 + $0xa4] sm:$0xf]
    %v79 = vld [vmem:[%s2 + $0xa8] sm:$0xf]
    %v80 = vld [vmem:[%s2 + $0xac] sm:$0xf]
    %v81 = vld [vmem:[%s2 + $0xb0] sm:$0xf]
    %v82 = vld [vmem:[%s2 + $0xb4] sm:$0xf]
    %v83 = vld [vmem:[%s2 + $0xb8] sm:$0xf]
    %v84 = vld [vmem:[%s2 + $0xbc] sm:$0xf]
    %v85 = vpack.c.bf16 %v29, %v28
    %v86 = vpack.c.bf16 %v34, %v33
    %v87 = vpack.c.bf16 %v31, %v30
    %v88 = vpack.c.bf16 %v36, %v35
    %v137 = vunpack.c.l.b16 %v37
    %v138 = vunpack.c.l.b16 %v38
    %v139 = vunpack.c.l.b16 %v39
    %v140 = vunpack.c.l.b16 %v40
    %v141 = vunpack.c.l.b16 %v41
    %v142 = vunpack.c.l.b16 %v42
    %v143 = vunpack.c.l.b16 %v43
    %v144 = vunpack.c.l.b16 %v44
    %v145 = vunpack.c.l.b16 %v45
    %v146 = vunpack.c.l.b16 %v46
    %v147 = vunpack.c.l.b16 %v47
    %v148 = vunpack.c.l.b16 %v48
    %v149 = vunpack.c.l.b16 %v49
    %v150 = vunpack.c.l.b16 %v50
    %v151 = vunpack.c.l.b16 %v51
    %v152 = vunpack.c.l.b16 %v52
    %v153 = vunpack.c.l.b16 %v53
    %v154 = vunpack.c.l.b16 %v54
    %v155 = vunpack.c.l.b16 %v55
    %v156 = vunpack.c.l.b16 %v56
    %v157 = vunpack.c.l.b16 %v57
    %v158 = vunpack.c.l.b16 %v58
    %v159 = vunpack.c.l.b16 %v59
    %v160 = vunpack.c.l.b16 %v60
    %v161 = vunpack.c.l.b16 %v61
    %v162 = vunpack.c.l.b16 %v62
    %v163 = vunpack.c.l.b16 %v63
    %v164 = vunpack.c.l.b16 %v64
    %v165 = vunpack.c.l.b16 %v65
    %v166 = vunpack.c.l.b16 %v66
    %v167 = vunpack.c.l.b16 %v67
    %v168 = vunpack.c.l.b16 %v68
    %v169 = vunpack.c.l.b16 %v69
    %v170 = vunpack.c.l.b16 %v70
    %v171 = vunpack.c.l.b16 %v71
    %v172 = vunpack.c.l.b16 %v72
    %v173 = vunpack.c.l.b16 %v73
    %v174 = vunpack.c.l.b16 %v74
    %v175 = vunpack.c.l.b16 %v75
    %v176 = vunpack.c.l.b16 %v76
    %v177 = vunpack.c.l.b16 %v77
    %v178 = vunpack.c.l.b16 %v78
    %v179 = vunpack.c.l.b16 %v79
    %v180 = vunpack.c.l.b16 %v80
    %v181 = vunpack.c.l.b16 %v81
    %v182 = vunpack.c.l.b16 %v82
    %v183 = vunpack.c.l.b16 %v83
    %v184 = vunpack.c.l.b16 %v84
    %v185 = vpack.c.b16 %v138, %v137
    %v186 = vpack.c.b16 %v140, %v139
    %v187 = vpack.c.b16 %v142, %v141
    %v188 = vpack.c.b16 %v144, %v143
    %v189 = vpack.c.b16 %v146, %v145
    %v190 = vpack.c.b16 %v148, %v147
    %v191 = vpack.c.b16 %v150, %v149
    %v192 = vpack.c.b16 %v152, %v151
    %v193 = vpack.c.b16 %v154, %v153
    %v194 = vpack.c.b16 %v156, %v155
    %v195 = vpack.c.b16 %v158, %v157
    %v196 = vpack.c.b16 %v160, %v159
    %v197 = vpack.c.b16 %v162, %v161
    %v198 = vpack.c.b16 %v164, %v163
    %v199 = vpack.c.b16 %v166, %v165
    %v200 = vpack.c.b16 %v168, %v167
    %v201 = vpack.c.b16 %v170, %v169
    %v202 = vpack.c.b16 %v172, %v171
    %v203 = vpack.c.b16 %v174, %v173
    %v204 = vpack.c.b16 %v176, %v175
    %v205 = vpack.c.b16 %v178, %v177
    %v206 = vpack.c.b16 %v180, %v179
    %v207 = vpack.c.b16 %v182, %v181
    %v208 = vpack.c.b16 %v184, %v183
    %vm209 = vcmask 261120
    %v211 = vsel %vm209, %v185, 0
    %v214 = vsel %vm209, %v186, 0
    %v217 = vsel %vm209, %v187, 0
    %v220 = vsel %vm209, %v188, 0
    %v223 = vsel %vm209, %v189, 0
    %v226 = vsel %vm209, %v190, 0
    %v229 = vsel %vm209, %v191, 0
    %v232 = vsel %vm209, %v192, 0
    %v235 = vsel %vm209, %v193, 0
    %v238 = vsel %vm209, %v194, 0
    %v241 = vsel %vm209, %v195, 0
    %v244 = vsel %vm209, %v196, 0
    %v247 = vsel %vm209, %v197, 0
    %v250 = vsel %vm209, %v198, 0
    %v253 = vsel %vm209, %v199, 0
    %v256 = vsel %vm209, %v200, 0
    %v259 = vsel %vm209, %v201, 0
    %v262 = vsel %vm209, %v202, 0
    %v265 = vsel %vm209, %v203, 0
    %v268 = vsel %vm209, %v204, 0
    %v271 = vsel %vm209, %v205, 0
    %v274 = vsel %vm209, %v206, 0
    %v277 = vsel %vm209, %v207, 0
    %v280 = vsel %vm209, %v208, 0
    %282 = vmatprep.subr.bf16.mxu0 %v86
    %283 = vmatpush1.bf16.msra.mxu0 %v85
    %284 = vmatprep.subr.bf16.mxu0 %v88
    %285 = vmatpush1.bf16.msra.mxu0 %v87
    %286 = vmatprep.subr.bf16.mxu0 0
    %287 = vmatpush1.bf16.msra.mxu0 0
    %288 = vmatprep.subr.bf16.mxu0 0
    %289 = vmatpush1.bf16.msra.mxu0 0
    %290 = vmatprep.subr.bf16.mxu0 0
    %291 = vmatpush1.bf16.msra.mxu0 0
    %292 = vmatprep.subr.bf16.mxu0 0
    %293 = vmatpush1.bf16.msra.mxu0 0
    %294 = vmatprep.subr.bf16.mxu0 0
    %295 = vmatpush1.bf16.msra.mxu0 0
    %296 = vmatprep.subr.bf16.mxu0 0
    %297 = vmatpush1.bf16.msra.mxu0 0
    %298 = vmatprep.subr.bf16.mxu0 0
    %299 = vmatpush1.bf16.msra.mxu0 0
    %300 = vmatprep.subr.bf16.mxu0 0
    %301 = vmatpush1.bf16.msra.mxu0 0
    %302 = vmatprep.subr.bf16.mxu0 0
    %303 = vmatpush1.bf16.msra.mxu0 0
    %304 = vmatprep.subr.bf16.mxu0 0
    %305 = vmatpush1.bf16.msra.mxu0 0
    %306 = vmatprep.subr.bf16.mxu0 0
    %307 = vmatpush1.bf16.msra.mxu0 0
    %308 = vmatprep.subr.bf16.mxu0 0
    %309 = vmatpush1.bf16.msra.mxu0 0
    %310 = vmatprep.subr.bf16.mxu0 0
    %311 = vmatpush1.bf16.msra.mxu0 0
    %312 = vmatprep.subr.bf16.mxu0 0
    %313 = vmatpush1.bf16.msra.mxu0 0
    %314 = vmatprep.mubr.bf16.mxu0 0
    %315 = vmatmul.mubr.bf16.gmra.mrb[0].mxu0 %v211
    %v316 = vpop.f32.mrb[0].mxu0
    %v317 = vadd.f32 0.0, %v316
    %v318 = vpop.f32.mrb[0].mxu0
    %v319 = vadd.f32 0.0, %v318
    %v320 = vpop.f32.mrb[0].mxu0
    %v321 = vadd.f32 0.0, %v320
    %v322 = vpop.f32.mrb[0].mxu0
    %v323 = vadd.f32 0.0, %v322
    %324 = vmatprep.mubr.bf16.mxu0 0
    %325 = vmatmul.mubr.bf16.gmra.mrb[0].mxu0 %v214
    %v326 = vpop.f32.mrb[0].mxu0
    %v327 = vadd.f32 0.0, %v326
    %v328 = vpop.f32.mrb[0].mxu0
    %v329 = vadd.f32 0.0, %v328
    %v330 = vpop.f32.mrb[0].mxu0
    %v331 = vadd.f32 0.0, %v330
    %v332 = vpop.f32.mrb[0].mxu0
    %v333 = vadd.f32 0.0, %v332
    %334 = vmatprep.mubr.bf16.mxu0 0
    %335 = vmatmul.mubr.bf16.gmra.mrb[0].mxu0 %v217
    %v336 = vpop.f32.mrb[0].mxu0
    %v337 = vadd.f32 0.0, %v336
    %v338 = vpop.f32.mrb[0].mxu0
    %v339 = vadd.f32 0.0, %v338
    %v340 = vpop.f32.mrb[0].mxu0
    %v341 = vadd.f32 0.0, %v340
    %v342 = vpop.f32.mrb[0].mxu0
    %v343 = vadd.f32 0.0, %v342
    %344 = vmatprep.mubr.bf16.mxu0 0
    %345 = vmatmul.mubr.bf16.gmra.mrb[0].mxu0 %v220
    %v346 = vpop.f32.mrb[0].mxu0
    %v347 = vadd.f32 0.0, %v346
    %v348 = vpop.f32.mrb[0].mxu0
    %v349 = vadd.f32 0.0, %v348
    %v350 = vpop.f32.mrb[0].mxu0
    %v351 = vadd.f32 0.0, %v350
    %v352 = vpop.f32.mrb[0].mxu0
    %v353 = vadd.f32 0.0, %v352
    %354 = vmatprep.mubr.bf16.mxu0 0
    %355 = vmatmul.mubr.bf16.gmra.mrb[0].mxu0 %v223
    %v356 = vpop.f32.mrb[0].mxu0
    %v357 = vadd.f32 0.0, %v356
    %v358 = vpop.f32.mrb[0].mxu0
    %v359 = vadd.f32 0.0, %v358
    %v360 = vpop.f32.mrb[0].mxu0
    %v361 = vadd.f32 0.0, %v360
    %v362 = vpop.f32.mrb[0].mxu0
    %v363 = vadd.f32 0.0, %v362
    %364 = vmatprep.mubr.bf16.mxu0 0
    %365 = vmatmul.mubr.bf16.gmra.mrb[0].mxu0 %v226
    %v366 = vpop.f32.mrb[0].mxu0
    %v367 = vadd.f32 0.0, %v366
    %v368 = vpop.f32.mrb[0].mxu0
    %v369 = vadd.f32 0.0, %v368
    %v370 = vpop.f32.mrb[0].mxu0
    %v371 = vadd.f32 0.0, %v370
    %v372 = vpop.f32.mrb[0].mxu0
    %v373 = vadd.f32 0.0, %v372
    %374 = vmatprep.mubr.bf16.mxu0 0
    %375 = vmatmul.mubr.bf16.gmra.mrb[0].mxu0 %v229
    %v376 = vpop.f32.mrb[0].mxu0
    %v377 = vadd.f32 0.0, %v376
    %v378 = vpop.f32.mrb[0].mxu0
    %v379 = vadd.f32 0.0, %v378
    %v380 = vpop.f32.mrb[0].mxu0
    %v381 = vadd.f32 0.0, %v380
    %v382 = vpop.f32.mrb[0].mxu0
    %v383 = vadd.f32 0.0, %v382
    %384 = vmatprep.mubr.bf16.mxu0 0
    %385 = vmatmul.mubr.bf16.gmra.mrb[0].mxu0 %v232
    %v386 = vpop.f32.mrb[0].mxu0
    %v387 = vadd.f32 0.0, %v386
    %v388 = vpop.f32.mrb[0].mxu0
    %v389 = vadd.f32 0.0, %v388
    %v390 = vpop.f32.mrb[0].mxu0
    %v391 = vadd.f32 0.0, %v390
    %v392 = vpop.f32.mrb[0].mxu0
    %v393 = vadd.f32 0.0, %v392
    %394 = vmatprep.mubr.bf16.mxu0 0
    %395 = vmatmul.mubr.bf16.gmra.mrb[0].mxu0 %v235
    %v396 = vpop.f32.mrb[0].mxu0
    %v397 = vadd.f32 0.0, %v396
    %v398 = vpop.f32.mrb[0].mxu0
    %v399 = vadd.f32 0.0, %v398
    %v400 = vpop.f32.mrb[0].mxu0
    %v401 = vadd.f32 0.0, %v400
    %v402 = vpop.f32.mrb[0].mxu0
    %v403 = vadd.f32 0.0, %v402
    %404 = vmatprep.mubr.bf16.mxu0 0
    %405 = vmatmul.mubr.bf16.gmra.mrb[0].mxu0 %v238
    %v406 = vpop.f32.mrb[0].mxu0
    %v407 = vadd.f32 0.0, %v406
    %v408 = vpop.f32.mrb[0].mxu0
    %v409 = vadd.f32 0.0, %v408
    %v410 = vpop.f32.mrb[0].mxu0
    %v411 = vadd.f32 0.0, %v410
    %v412 = vpop.f32.mrb[0].mxu0
    %v413 = vadd.f32 0.0, %v412
    %414 = vmatprep.mubr.bf16.mxu0 0
    %415 = vmatmul.mubr.bf16.gmra.mrb[0].mxu0 %v241
    %v416 = vpop.f32.mrb[0].mxu0
    %v417 = vadd.f32 0.0, %v416
    %v418 = vpop.f32.mrb[0].mxu0
    %v419 = vadd.f32 0.0, %v418
    %v420 = vpop.f32.mrb[0].mxu0
    %v421 = vadd.f32 0.0, %v420
    %v422 = vpop.f32.mrb[0].mxu0
    %v423 = vadd.f32 0.0, %v422
    %424 = vmatprep.mubr.bf16.mxu0 0
    %425 = vmatmul.mubr.bf16.gmra.mrb[0].mxu0 %v244
    %v426 = vpop.f32.mrb[0].mxu0
    %v427 = vadd.f32 0.0, %v426
    %v428 = vpop.f32.mrb[0].mxu0
    %v429 = vadd.f32 0.0, %v428
    %v430 = vpop.f32.mrb[0].mxu0
    %v431 = vadd.f32 0.0, %v430
    %v432 = vpop.f32.mrb[0].mxu0
    %v433 = vadd.f32 0.0, %v432
    %434 = vmatprep.mubr.bf16.mxu0 0
    %435 = vmatmul.mubr.bf16.gmra.mrb[0].mxu0 %v247
    %v436 = vpop.f32.mrb[0].mxu0
    %v437 = vadd.f32 0.0, %v436
    %v438 = vpop.f32.mrb[0].mxu0
    %v439 = vadd.f32 0.0, %v438
    %v440 = vpop.f32.mrb[0].mxu0
    %v441 = vadd.f32 0.0, %v440
    %v442 = vpop.f32.mrb[0].mxu0
    %v443 = vadd.f32 0.0, %v442
    %444 = vmatprep.mubr.bf16.mxu0 0
    %445 = vmatmul.mubr.bf16.gmra.mrb[0].mxu0 %v250
    %v446 = vpop.f32.mrb[0].mxu0
    %v447 = vadd.f32 0.0, %v446
    %v448 = vpop.f32.mrb[0].mxu0
    %v449 = vadd.f32 0.0, %v448
    %v450 = vpop.f32.mrb[0].mxu0
    %v451 = vadd.f32 0.0, %v450
    %v452 = vpop.f32.mrb[0].mxu0
    %v453 = vadd.f32 0.0, %v452
    %454 = vmatprep.mubr.bf16.mxu0 0
    %455 = vmatmul.mubr.bf16.gmra.mrb[0].mxu0 %v253
    %v456 = vpop.f32.mrb[0].mxu0
    %v457 = vadd.f32 0.0, %v456
    %v458 = vpop.f32.mrb[0].mxu0
    %v459 = vadd.f32 0.0, %v458
    %v460 = vpop.f32.mrb[0].mxu0
    %v461 = vadd.f32 0.0, %v460
    %v462 = vpop.f32.mrb[0].mxu0
    %v463 = vadd.f32 0.0, %v462
    %464 = vmatprep.mubr.bf16.mxu0 0
    %465 = vmatmul.mubr.bf16.gmra.mrb[0].mxu0 %v256
    %v466 = vpop.f32.mrb[0].mxu0
    %v467 = vadd.f32 0.0, %v466
    %v468 = vpop.f32.mrb[0].mxu0
    %v469 = vadd.f32 0.0, %v468
    %v470 = vpop.f32.mrb[0].mxu0
    %v471 = vadd.f32 0.0, %v470
    %v472 = vpop.f32.mrb[0].mxu0
    %v473 = vadd.f32 0.0, %v472
    %474 = vmatprep.mubr.bf16.mxu0 0
    %475 = vmatmul.mubr.bf16.gmra.mrb[0].mxu0 %v259
    %v476 = vpop.f32.mrb[0].mxu0
    %v477 = vadd.f32 0.0, %v476
    %v478 = vpop.f32.mrb[0].mxu0
    %v479 = vadd.f32 0.0, %v478
    %v480 = vpop.f32.mrb[0].mxu0
    %v481 = vadd.f32 0.0, %v480
    %v482 = vpop.f32.mrb[0].mxu0
    %v483 = vadd.f32 0.0, %v482
    %484 = vmatprep.mubr.bf16.mxu0 0
    %485 = vmatmul.mubr.bf16.gmra.mrb[0].mxu0 %v262
    %v486 = vpop.f32.mrb[0].mxu0
    %v487 = vadd.f32 0.0, %v486
    %v488 = vpop.f32.mrb[0].mxu0
    %v489 = vadd.f32 0.0, %v488
    %v490 = vpop.f32.mrb[0].mxu0
    %v491 = vadd.f32 0.0, %v490
    %v492 = vpop.f32.mrb[0].mxu0
    %v493 = vadd.f32 0.0, %v492
    %494 = vmatprep.mubr.bf16.mxu0 0
    %495 = vmatmul.mubr.bf16.gmra.mrb[0].mxu0 %v265
    %v496 = vpop.f32.mrb[0].mxu0
    %v497 = vadd.f32 0.0, %v496
    %v498 = vpop.f32.mrb[0].mxu0
    %v499 = vadd.f32 0.0, %v498
    %v500 = vpop.f32.mrb[0].mxu0
    %v501 = vadd.f32 0.0, %v500
    %v502 = vpop.f32.mrb[0].mxu0
    %v503 = vadd.f32 0.0, %v502
    %504 = vmatprep.mubr.bf16.mxu0 0
    %505 = vmatmul.mubr.bf16.gmra.mrb[0].mxu0 %v268
    %v506 = vpop.f32.mrb[0].mxu0
    %v507 = vadd.f32 0.0, %v506
    %v508 = vpop.f32.mrb[0].mxu0
    %v509 = vadd.f32 0.0, %v508
    %v510 = vpop.f32.mrb[0].mxu0
    %v511 = vadd.f32 0.0, %v510
    %v512 = vpop.f32.mrb[0].mxu0
    %v513 = vadd.f32 0.0, %v512
    %514 = vmatprep.mubr.bf16.mxu0 0
    %515 = vmatmul.mubr.bf16.gmra.mrb[0].mxu0 %v271
    %v516 = vpop.f32.mrb[0].mxu0
    %v517 = vadd.f32 0.0, %v516
    %v518 = vpop.f32.mrb[0].mxu0
    %v519 = vadd.f32 0.0, %v518
    %v520 = vpop.f32.mrb[0].mxu0
    %v521 = vadd.f32 0.0, %v520
    %v522 = vpop.f32.mrb[0].mxu0
    %v523 = vadd.f32 0.0, %v522
    %524 = vmatprep.mubr.bf16.mxu0 0
    %525 = vmatmul.mubr.bf16.gmra.mrb[0].mxu0 %v274
    %v526 = vpop.f32.mrb[0].mxu0
    %v527 = vadd.f32 0.0, %v526
    %v528 = vpop.f32.mrb[0].mxu0
    %v529 = vadd.f32 0.0, %v528
    %v530 = vpop.f32.mrb[0].mxu0
    %v531 = vadd.f32 0.0, %v530
    %v532 = vpop.f32.mrb[0].mxu0
    %v533 = vadd.f32 0.0, %v532
    %534 = vmatprep.mubr.bf16.mxu0 0
    %535 = vmatmul.mubr.bf16.gmra.mrb[0].mxu0 %v277
    %v536 = vpop.f32.mrb[0].mxu0
    %v537 = vadd.f32 0.0, %v536
    %v538 = vpop.f32.mrb[0].mxu0
    %v539 = vadd.f32 0.0, %v538
    %v540 = vpop.f32.mrb[0].mxu0
    %v541 = vadd.f32 0.0, %v540
    %v542 = vpop.f32.mrb[0].mxu0
    %v543 = vadd.f32 0.0, %v542
    %544 = vmatprep.mubr.bf16.mxu0 0
    %545 = vmatmul.mubr.bf16.gmra.mrb[0].mxu0 %v280
    %v546 = vpop.f32.mrb[0].mxu0
    %v547 = vadd.f32 0.0, %v546
    %v548 = vpop.f32.mrb[0].mxu0
    %v549 = vadd.f32 0.0, %v548
    %v550 = vpop.f32.mrb[0].mxu0
    %v551 = vadd.f32 0.0, %v550
    %v552 = vpop.f32.mrb[0].mxu0
    %v553 = vadd.f32 0.0, %v552
    %554 = vdwg.mxu0
    %v555 = vmax.f32 %v317, %v321
    %v556 = vmax.f32 %v555, %v327
    %v557 = vmax.f32 %v556, %v331
    %v558 = vrot.slane %v557, 4
    %v559 = vmax.f32 %v557, %v558
    %v560 = vrot.slane %v559, 2
    %v561 = vmax.f32 %v559, %v560
    %v562 = vrot.slane %v561, 1
    %v563 = vmax.f32 %v561, %v562
    %v564 = vmax.f32 %v319, %v323
    %v565 = vmax.f32 %v564, %v329
    %v566 = vmax.f32 %v565, %v333
    %v567 = vrot.slane %v566, 4
    %v568 = vmax.f32 %v566, %v567
    %v569 = vrot.slane %v568, 2
    %v570 = vmax.f32 %v568, %v569
    %v571 = vrot.slane %v570, 1
    %v572 = vmax.f32 %v570, %v571
    %v573 = vmax.f32 %v337, %v341
    %v574 = vmax.f32 %v573, %v347
    %v575 = vmax.f32 %v574, %v351
    %v576 = vrot.slane %v575, 4
    %v577 = vmax.f32 %v575, %v576
    %v578 = vrot.slane %v577, 2
    %v579 = vmax.f32 %v577, %v578
    %v580 = vrot.slane %v579, 1
    %v581 = vmax.f32 %v579, %v580
    %v582 = vmax.f32 %v339, %v343
    %v583 = vmax.f32 %v582, %v349
    %v584 = vmax.f32 %v583, %v353
    %v585 = vrot.slane %v584, 4
    %v586 = vmax.f32 %v584, %v585
    %v587 = vrot.slane %v586, 2
    %v588 = vmax.f32 %v586, %v587
    %v589 = vrot.slane %v588, 1
    %v590 = vmax.f32 %v588, %v589
    %v591 = vmax.f32 %v357, %v361
    %v592 = vmax.f32 %v591, %v367
    %v593 = vmax.f32 %v592, %v371
    %v594 = vrot.slane %v593, 4
    %v595 = vmax.f32 %v593, %v594
    %v596 = vrot.slane %v595, 2
    %v597 = vmax.f32 %v595, %v596
    %v598 = vrot.slane %v597, 1
    %v599 = vmax.f32 %v597, %v598
    %v600 = vmax.f32 %v359, %v363
    %v601 = vmax.f32 %v600, %v369
    %v602 = vmax.f32 %v601, %v373
    %v603 = vrot.slane %v602, 4
    %v604 = vmax.f32 %v602, %v603
    %v605 = vrot.slane %v604, 2
    %v606 = vmax.f32 %v604, %v605
    %v607 = vrot.slane %v606, 1
    %v608 = vmax.f32 %v606, %v607
    %v609 = vmax.f32 %v377, %v381
    %v610 = vmax.f32 %v609, %v387
    %v611 = vmax.f32 %v610, %v391
    %v612 = vrot.slane %v611, 4
    %v613 = vmax.f32 %v611, %v612
    %v614 = vrot.slane %v613, 2
    %v615 = vmax.f32 %v613, %v614
    %v616 = vrot.slane %v615, 1
    %v617 = vmax.f32 %v615, %v616
    %v618 = vmax.f32 %v379, %v383
    %v619 = vmax.f32 %v618, %v389
    %v620 = vmax.f32 %v619, %v393
    %v621 = vrot.slane %v620, 4
    %v622 = vmax.f32 %v620, %v621
    %v623 = vrot.slane %v622, 2
    %v624 = vmax.f32 %v622, %v623
    %v625 = vrot.slane %v624, 1
    %v626 = vmax.f32 %v624, %v625
    %v627 = vsub.f32 %v317, %v563
    %v628 = vsub.f32 %v319, %v572
    %v629 = vsub.f32 %v321, %v563
    %v630 = vsub.f32 %v323, %v572
    %v631 = vsub.f32 %v327, %v563
    %v632 = vsub.f32 %v329, %v572
    %v633 = vsub.f32 %v331, %v563
    %v634 = vsub.f32 %v333, %v572
    %v635 = vsub.f32 %v337, %v581
    %v636 = vsub.f32 %v339, %v590
    %v637 = vsub.f32 %v341, %v581
    %v638 = vsub.f32 %v343, %v590
    %v639 = vsub.f32 %v347, %v581
    %v640 = vsub.f32 %v349, %v590
    %v641 = vsub.f32 %v351, %v581
    %v642 = vsub.f32 %v353, %v590
    %v643 = vsub.f32 %v357, %v599
    %v644 = vsub.f32 %v359, %v608
    %v645 = vsub.f32 %v361, %v599
    %v646 = vsub.f32 %v363, %v608
    %v647 = vsub.f32 %v367, %v599
    %v648 = vsub.f32 %v369, %v608
    %v649 = vsub.f32 %v371, %v599
    %v650 = vsub.f32 %v373, %v608
    %v651 = vsub.f32 %v377, %v617
    %v652 = vsub.f32 %v379, %v626
    %v653 = vsub.f32 %v381, %v617
    %v654 = vsub.f32 %v383, %v626
    %v655 = vsub.f32 %v387, %v617
    %v656 = vsub.f32 %v389, %v626
    %v657 = vsub.f32 %v391, %v617
    %v658 = vsub.f32 %v393, %v626
    %v659 = vmul.f32 %v627, 1.442695
    %v660 = vpow.pop %v659
    %v661 = vmul.f32 %v628, 1.442695
    %v662 = vpow.pop %v661
    %v663 = vmul.f32 %v629, 1.442695
    %v664 = vpow.pop %v663
    %v665 = vmul.f32 %v630, 1.442695
    %v666 = vpow.pop %v665
    %v667 = vmul.f32 %v631, 1.442695
    %v668 = vpow.pop %v667
    %v669 = vmul.f32 %v632, 1.442695
    %v670 = vpow.pop %v669
    %v671 = vmul.f32 %v633, 1.442695
    %v672 = vpow.pop %v671
    %v673 = vmul.f32 %v634, 1.442695
    %v674 = vpow.pop %v673
    %v675 = vmul.f32 %v635, 1.442695
    %v676 = vpow.pop %v675
    %v677 = vmul.f32 %v636, 1.442695
    %v678 = vpow.pop %v677
    %v679 = vmul.f32 %v637, 1.442695
    %v680 = vpow.pop %v679
    %v681 = vmul.f32 %v638, 1.442695
    %v682 = vpow.pop %v681
    %v683 = vmul.f32 %v639, 1.442695
    %v684 = vpow.pop %v683
    %v685 = vmul.f32 %v640, 1.442695
    %v686 = vpow.pop %v685
    %v687 = vmul.f32 %v641, 1.442695
    %v688 = vpow.pop %v687
    %v689 = vmul.f32 %v642, 1.442695
    %v690 = vpow.pop %v689
    %v691 = vmul.f32 %v643, 1.442695
    %v692 = vpow.pop %v691
    %v693 = vmul.f32 %v644, 1.442695
    %v694 = vpow.pop %v693
    %v695 = vmul.f32 %v645, 1.442695
    %v696 = vpow.pop %v695
    %v697 = vmul.f32 %v646, 1.442695
    %v698 = vpow.pop %v697
    %v699 = vmul.f32 %v647, 1.442695
    %v700 = vpow.pop %v699
    %v701 = vmul.f32 %v648, 1.442695
    %v702 = vpow.pop %v701
    %v703 = vmul.f32 %v649, 1.442695
    %v704 = vpow.pop %v703
    %v705 = vmul.f32 %v650, 1.442695
    %v706 = vpow.pop %v705
    %v707 = vmul.f32 %v651, 1.442695
    %v708 = vpow.pop %v707
    %v709 = vmul.f32 %v652, 1.442695
    %v710 = vpow.pop %v709
    %v711 = vmul.f32 %v653, 1.442695
    %v712 = vpow.pop %v711
    %v713 = vmul.f32 %v654, 1.442695
    %v714 = vpow.pop %v713
    %v715 = vmul.f32 %v655, 1.442695
    %v716 = vpow.pop %v715
    %v717 = vmul.f32 %v656, 1.442695
    %v718 = vpow.pop %v717
    %v719 = vmul.f32 %v657, 1.442695
    %v720 = vpow.pop %v719
    %v721 = vmul.f32 %v658, 1.442695
    %v722 = vpow.pop %v721
    %v723 = vadd.f32 %v660, %v664
    %v724 = vadd.f32 %v723, %v668
    %v725 = vadd.f32 %v724, %v672
    %v726 = vrot.slane %v725, 4
    %v727 = vadd.f32 %v725, %v726
    %v728 = vrot.slane %v727, 2
    %v729 = vadd.f32 %v727, %v728
    %v730 = vrot.slane %v729, 1
    %v731 = vadd.f32 %v729, %v730
    %v732 = vadd.f32 %v662, %v666
    %v733 = vadd.f32 %v732, %v670
    %v734 = vadd.f32 %v733, %v674
    %v735 = vrot.slane %v734, 4
    %v736 = vadd.f32 %v734, %v735
    %v737 = vrot.slane %v736, 2
    %v738 = vadd.f32 %v736, %v737
    %v739 = vrot.slane %v738, 1
    %v740 = vadd.f32 %v738, %v739
    %v741 = vadd.f32 %v676, %v680
    %v742 = vadd.f32 %v741, %v684
    %v743 = vadd.f32 %v742, %v688
    %v744 = vrot.slane %v743, 4
    %v745 = vadd.f32 %v743, %v744
    %v746 = vrot.slane %v745, 2
    %v747 = vadd.f32 %v745, %v746
    %v748 = vrot.slane %v747, 1
    %v749 = vadd.f32 %v747, %v748
    %v750 = vadd.f32 %v678, %v682
    %v751 = vadd.f32 %v750, %v686
    %v752 = vadd.f32 %v751, %v690
    %v753 = vrot.slane %v752, 4
    %v754 = vadd.f32 %v752, %v753
    %v755 = vrot.slane %v754, 2
    %v756 = vadd.f32 %v754, %v755
    %v757 = vrot.slane %v756, 1
    %v758 = vadd.f32 %v756, %v757
    %v759 = vadd.f32 %v692, %v696
    %v760 = vadd.f32 %v759, %v700
    %v761 = vadd.f32 %v760, %v704
    %v762 = vrot.slane %v761, 4
    %v763 = vadd.f32 %v761, %v762
    %v764 = vrot.slane %v763, 2
    %v765 = vadd.f32 %v763, %v764
    %v766 = vrot.slane %v765, 1
    %v767 = vadd.f32 %v765, %v766
    %v768 = vadd.f32 %v694, %v698
    %v769 = vadd.f32 %v768, %v702
    %v770 = vadd.f32 %v769, %v706
    %v771 = vrot.slane %v770, 4
    %v772 = vadd.f32 %v770, %v771
    %v773 = vrot.slane %v772, 2
    %v774 = vadd.f32 %v772, %v773
    %v775 = vrot.slane %v774, 1
    %v776 = vadd.f32 %v774, %v775
    %v777 = vadd.f32 %v708, %v712
    %v778 = vadd.f32 %v777, %v716
    %v779 = vadd.f32 %v778, %v720
    %v780 = vrot.slane %v779, 4
    %v781 = vadd.f32 %v779, %v780
    %v782 = vrot.slane %v781, 2
    %v783 = vadd.f32 %v781, %v782
    %v784 = vrot.slane %v783, 1
    %v785 = vadd.f32 %v783, %v784
    %v786 = vadd.f32 %v710, %v714
    %v787 = vadd.f32 %v786, %v718
    %v788 = vadd.f32 %v787, %v722
    %v789 = vrot.slane %v788, 4
    %v790 = vadd.f32 %v788, %v789
    %v791 = vrot.slane %v790, 2
    %v792 = vadd.f32 %v790, %v791
    %v793 = vrot.slane %v792, 1
    %v794 = vadd.f32 %v792, %v793
    %v795 = vrcp.pop %v731
    %v796 = vrcp.pop %v740
    %v797 = vrcp.pop %v749
    %v798 = vrcp.pop %v758
    %v799 = vrcp.pop %v767
    %v800 = vrcp.pop %v776
    %v801 = vrcp.pop %v785
    %v802 = vrcp.pop %v794
    %v803 = vmul.f32 %v795, 0.17677669
    %v804 = vmul.f32 %v796, 0.17677669
    %v805 = vmul.f32 %v797, 0.17677669
    %v806 = vmul.f32 %v798, 0.17677669
    %v807 = vmul.f32 %v799, 0.17677669
    %v808 = vmul.f32 %v800, 0.17677669
    %v809 = vmul.f32 %v801, 0.17677669
    %v810 = vmul.f32 %v802, 0.17677669
    %v811 = vmul.f32 %v660, %v803
    %v812 = vmul.f32 %v662, %v804
    %v813 = vmul.f32 %v664, %v803
    %v814 = vmul.f32 %v666, %v804
    %v815 = vmul.f32 %v668, %v803
    %v816 = vmul.f32 %v670, %v804
    %v817 = vmul.f32 %v672, %v803
    %v818 = vmul.f32 %v674, %v804
    %v819 = vmul.f32 %v676, %v805
    %v820 = vmul.f32 %v678, %v806
    %v821 = vmul.f32 %v680, %v805
    %v822 = vmul.f32 %v682, %v806
    %v823 = vmul.f32 %v684, %v805
    %v824 = vmul.f32 %v686, %v806
    %v825 = vmul.f32 %v688, %v805
    %v826 = vmul.f32 %v690, %v806
    %v827 = vmul.f32 %v692, %v807
    %v828 = vmul.f32 %v694, %v808
    %v829 = vmul.f32 %v696, %v807
    %v830 = vmul.f32 %v698, %v808
    %v831 = vmul.f32 %v700, %v807
    %v832 = vmul.f32 %v702, %v808
    %v833 = vmul.f32 %v704, %v807
    %v834 = vmul.f32 %v706, %v808
    %v835 = vmul.f32 %v708, %v809
    %v836 = vmul.f32 %v710, %v810
    %v837 = vmul.f32 %v712, %v809
    %v838 = vmul.f32 %v714, %v810
    %v839 = vmul.f32 %v716, %v809
    %v840 = vmul.f32 %v718, %v810
    %v841 = vmul.f32 %v720, %v809
    %v842 = vmul.f32 %v722, %v810
    %v843 = vld [vmem:[%s1] sm:$0xf]
    %v844 = vld [vmem:[%s1 + $0x4] sm:$0xf]
    %v845 = vld [vmem:[%s1 + $0x8] sm:$0xf]
    %v846 = vld [vmem:[%s1 + $0xc] sm:$0xf]
    %v847 = vld [vmem:[%s1 + $0x10] sm:$0xf]
    %v848 = vld [vmem:[%s1 + $0x14] sm:$0xf]
    %v849 = vld [vmem:[%s1 + $0x18] sm:$0xf]
    %v850 = vld [vmem:[%s1 + $0x1c] sm:$0xf]
    %v851 = vld [vmem:[%s1 + $0x20] sm:$0xf]
    %v852 = vld [vmem:[%s1 + $0x24] sm:$0xf]
    %v853 = vld [vmem:[%s1 + $0x28] sm:$0xf]
    %v854 = vld [vmem:[%s1 + $0x2c] sm:$0xf]
    %v855 = vld [vmem:[%s1 + $0x30] sm:$0xf]
    %v856 = vld [vmem:[%s1 + $0x34] sm:$0xf]
    %v857 = vld [vmem:[%s1 + $0x38] sm:$0xf]
    %v858 = vld [vmem:[%s1 + $0x3c] sm:$0xf]
    %859 = vmax.xlane.f32.xlu0 %v397
    %v860 = vpop.xlane.xlu0 %859
    %861 = vmax.xlane.f32.xlu0 %v401
    %v862 = vpop.xlane.xlu0 %861
    %863 = vmax.xlane.f32.xlu0 %v407
    %v864 = vpop.xlane.xlu0 %863
    %865 = vmax.xlane.f32.xlu0 %v411
    %v866 = vpop.xlane.xlu0 %865
    %867 = vmax.xlane.f32.xlu0 %v417
    %v868 = vpop.xlane.xlu0 %867
    %869 = vmax.xlane.f32.xlu0 %v421
    %v870 = vpop.xlane.xlu0 %869
    %871 = vmax.xlane.f32.xlu0 %v427
    %v872 = vpop.xlane.xlu0 %871
    %873 = vmax.xlane.f32.xlu0 %v431
    %v874 = vpop.xlane.xlu0 %873
    %875 = vmax.xlane.f32.xlu0 %v437
    %v876 = vpop.xlane.xlu0 %875
    %877 = vmax.xlane.f32.xlu0 %v441
    %v878 = vpop.xlane.xlu0 %877
    %879 = vmax.xlane.f32.xlu0 %v447
    %v880 = vpop.xlane.xlu0 %879
    %881 = vmax.xlane.f32.xlu0 %v451
    %v882 = vpop.xlane.xlu0 %881
    %883 = vmax.xlane.f32.xlu0 %v457
    %v884 = vpop.xlane.xlu0 %883
    %885 = vmax.xlane.f32.xlu0 %v461
    %v886 = vpop.xlane.xlu0 %885
    %887 = vmax.xlane.f32.xlu0 %v467
    %v888 = vpop.xlane.xlu0 %887
    %889 = vmax.xlane.f32.xlu0 %v471
    %v890 = vpop.xlane.xlu0 %889
    %v891 = vsub.f32 %v397, %v860
    %v892 = vsub.f32 %v401, %v862
    %v893 = vsub.f32 %v407, %v864
    %v894 = vsub.f32 %v411, %v866
    %v895 = vsub.f32 %v417, %v868
    %v896 = vsub.f32 %v421, %v870
    %v897 = vsub.f32 %v427, %v872
    %v898 = vsub.f32 %v431, %v874
    %v899 = vsub.f32 %v437, %v876
    %v900 = vsub.f32 %v441, %v878
    %v901 = vsub.f32 %v447, %v880
    %v902 = vsub.f32 %v451, %v882
    %v903 = vsub.f32 %v457, %v884
    %v904 = vsub.f32 %v461, %v886
    %v905 = vsub.f32 %v467, %v888
    %v906 = vsub.f32 %v471, %v890
    %v907 = vmul.f32 %v891, 1.442695
    %v908 = vpow.pop %v907
    %v909 = vmul.f32 %v892, 1.442695
    %v910 = vpow.pop %v909
    %v911 = vmul.f32 %v893, 1.442695
    %v912 = vpow.pop %v911
    %v913 = vmul.f32 %v894, 1.442695
    %v914 = vpow.pop %v913
    %v915 = vmul.f32 %v895, 1.442695
    %v916 = vpow.pop %v915
    %v917 = vmul.f32 %v896, 1.442695
    %v918 = vpow.pop %v917
    %v919 = vmul.f32 %v897, 1.442695
    %v920 = vpow.pop %v919
    %v921 = vmul.f32 %v898, 1.442695
    %v922 = vpow.pop %v921
    %v923 = vmul.f32 %v899, 1.442695
    %v924 = vpow.pop %v923
    %v925 = vmul.f32 %v900, 1.442695
    %v926 = vpow.pop %v925
    %v927 = vmul.f32 %v901, 1.442695
    %v928 = vpow.pop %v927
    %v929 = vmul.f32 %v902, 1.442695
    %v930 = vpow.pop %v929
    %v931 = vmul.f32 %v903, 1.442695
    %v932 = vpow.pop %v931
    %v933 = vmul.f32 %v904, 1.442695
    %v934 = vpow.pop %v933
    %v935 = vmul.f32 %v905, 1.442695
    %v936 = vpow.pop %v935
    %v937 = vmul.f32 %v906, 1.442695
    %v938 = vpow.pop %v937
    %939 = vadd.xlane.f32.xlu0 %v908
    %v940 = vpop.xlane.xlu0 %939
    %941 = vadd.xlane.f32.xlu0 %v910
    %v942 = vpop.xlane.xlu0 %941
    %943 = vadd.xlane.f32.xlu0 %v912
    %v944 = vpop.xlane.xlu0 %943
    %945 = vadd.xlane.f32.xlu0 %v914
    %v946 = vpop.xlane.xlu0 %945
    %947 = vadd.xlane.f32.xlu0 %v916
    %v948 = vpop.xlane.xlu0 %947
    %949 = vadd.xlane.f32.xlu0 %v918
    %v950 = vpop.xlane.xlu0 %949
    %951 = vadd.xlane.f32.xlu0 %v920
    %v952 = vpop.xlane.xlu0 %951
    %953 = vadd.xlane.f32.xlu0 %v922
    %v954 = vpop.xlane.xlu0 %953
    %955 = vadd.xlane.f32.xlu0 %v924
    %v956 = vpop.xlane.xlu0 %955
    %957 = vadd.xlane.f32.xlu0 %v926
    %v958 = vpop.xlane.xlu0 %957
    %959 = vadd.xlane.f32.xlu0 %v928
    %v960 = vpop.xlane.xlu0 %959
    %961 = vadd.xlane.f32.xlu0 %v930
    %v962 = vpop.xlane.xlu0 %961
    %963 = vadd.xlane.f32.xlu0 %v932
    %v964 = vpop.xlane.xlu0 %963
    %965 = vadd.xlane.f32.xlu0 %v934
    %v966 = vpop.xlane.xlu0 %965
    %967 = vadd.xlane.f32.xlu0 %v936
    %v968 = vpop.xlane.xlu0 %967
    %969 = vadd.xlane.f32.xlu0 %v938
    %v970 = vpop.xlane.xlu0 %969
    %v971 = vrcp.pop %v940
    %v972 = vrcp.pop %v942
    %v973 = vrcp.pop %v944
    %v974 = vrcp.pop %v946
    %v975 = vrcp.pop %v948
    %v976 = vrcp.pop %v950
    %v977 = vrcp.pop %v952
    %v978 = vrcp.pop %v954
    %v979 = vrcp.pop %v956
    %v980 = vrcp.pop %v958
    %v981 = vrcp.pop %v960
    %v982 = vrcp.pop %v962
    %v983 = vrcp.pop %v964
    %v984 = vrcp.pop %v966
    %v985 = vrcp.pop %v968
    %v986 = vrcp.pop %v970
    %v987 = vmul.f32 %v908, %v971
    %v988 = vmul.f32 %v910, %v972
    %v989 = vmul.f32 %v912, %v973
    %v990 = vmul.f32 %v914, %v974
    %v991 = vmul.f32 %v916, %v975
    %v992 = vmul.f32 %v918, %v976
    %v993 = vmul.f32 %v920, %v977
    %v994 = vmul.f32 %v922, %v978
    %v995 = vmul.f32 %v924, %v979
    %v996 = vmul.f32 %v926, %v980
    %v997 = vmul.f32 %v928, %v981
    %v998 = vmul.f32 %v930, %v982
    %v999 = vmul.f32 %v932, %v983
    %v1000 = vmul.f32 %v934, %v984
    %v1001 = vmul.f32 %v936, %v985
    %v1002 = vmul.f32 %v938, %v986
    %v1003 = vpack.c.bf16 %v481, %v477
    %v1004 = vpack.c.bf16 %v491, %v487
    %v1005 = vpack.c.bf16 %v501, %v497
    %v1006 = vpack.c.bf16 %v511, %v507
    %v1007 = vpack.c.bf16 %v521, %v517
    %v1008 = vpack.c.bf16 %v531, %v527
    %v1009 = vpack.c.bf16 %v541, %v537
    %v1010 = vpack.c.bf16 %v551, %v547
    %v1011 = vpack.c.bf16 %v988, %v987
    %v1012 = vpack.c.bf16 %v990, %v989
    %v1013 = vpack.c.bf16 %v992, %v991
    %v1014 = vpack.c.bf16 %v994, %v993
    %v1015 = vpack.c.bf16 %v996, %v995
    %v1016 = vpack.c.bf16 %v998, %v997
    %v1017 = vpack.c.bf16 %v1000, %v999
    %v1018 = vpack.c.bf16 %v1002, %v1001
    %1019 = vmatprep.subr.bf16.mxu0 0
    %1020 = vmatpush1.bf16.xpose.msra.mxu0 %v1011
    %1021 = vmatprep.subr.bf16.mxu0 0
    %1022 = vmatpush1.bf16.xpose.msra.mxu0 %v1012
    %1023 = vmatprep.subr.bf16.mxu0 0
    %1024 = vmatpush1.bf16.xpose.msra.mxu0 %v1013
    %1025 = vmatprep.subr.bf16.mxu0 0
    %1026 = vmatpush1.bf16.xpose.msra.mxu0 %v1014
    %1027 = vmatprep.subr.bf16.mxu0 0
    %1028 = vmatpush1.bf16.xpose.msra.mxu0 %v1015
    %1029 = vmatprep.subr.bf16.mxu0 0
    %1030 = vmatpush1.bf16.xpose.msra.mxu0 %v1016
    %1031 = vmatprep.subr.bf16.mxu0 0
    %1032 = vmatpush1.bf16.xpose.msra.mxu0 %v1017
    %1033 = vmatprep.subr.bf16.mxu0 0
    %1034 = vmatpush1.bf16.xpose.msra.mxu0 %v1018
    %1035 = vmatprep.subr.bf16.mxu0 0
    %1036 = vmatpush1.bf16.xpose.msra.mxu0 0
    %1037 = vmatprep.subr.bf16.mxu0 0
    %1038 = vmatpush1.bf16.xpose.msra.mxu0 0
    %1039 = vmatprep.subr.bf16.mxu0 0
    %1040 = vmatpush1.bf16.xpose.msra.mxu0 0
    %1041 = vmatprep.subr.bf16.mxu0 0
    %1042 = vmatpush1.bf16.xpose.msra.mxu0 0
    %1043 = vmatprep.subr.bf16.mxu0 0
    %1044 = vmatpush1.bf16.xpose.msra.mxu0 0
    %1045 = vmatprep.subr.bf16.mxu0 0
    %1046 = vmatpush1.bf16.xpose.msra.mxu0 0
    %1047 = vmatprep.subr.bf16.mxu0 0
    %1048 = vmatpush1.bf16.xpose.msra.mxu0 0
    %1049 = vmatprep.subr.bf16.mxu0 0
    %1050 = vmatpush1.bf16.xpose.msra.mxu0 0
    %1051 = vmatprep.mubr.bf16.mxu0 0
    %1052 = vmatmul.mubr.bf16.gmra.mrb[0].mxu0 %v1003
    %v1053 = vpop.f32.mrb[0].mxu0
    %v1054 = vadd.f32 0.0, %v1053
    %v1055 = vpop.f32.mrb[0].mxu0
    %v1056 = vpop.f32.mrb[0].mxu0
    %v1057 = vadd.f32 0.0, %v1056
    %v1058 = vpop.f32.mrb[0].mxu0
    %1059 = vmatprep.mubr.bf16.mxu0 0
    %1060 = vmatmul.mubr.bf16.gmra.mrb[0].mxu0 %v1004
    %v1061 = vpop.f32.mrb[0].mxu0
    %v1062 = vadd.f32 0.0, %v1061
    %v1063 = vpop.f32.mrb[0].mxu0
    %v1064 = vpop.f32.mrb[0].mxu0
    %v1065 = vadd.f32 0.0, %v1064
    %v1066 = vpop.f32.mrb[0].mxu0
    %1067 = vmatprep.mubr.bf16.mxu0 0
    %1068 = vmatmul.mubr.bf16.gmra.mrb[0].mxu0 %v1005
    %v1069 = vpop.f32.mrb[0].mxu0
    %v1070 = vadd.f32 0.0, %v1069
    %v1071 = vpop.f32.mrb[0].mxu0
    %v1072 = vpop.f32.mrb[0].mxu0
    %v1073 = vadd.f32 0.0, %v1072
    %v1074 = vpop.f32.mrb[0].mxu0
    %1075 = vmatprep.mubr.bf16.mxu0 0
    %1076 = vmatmul.mubr.bf16.gmra.mrb[0].mxu0 %v1006
    %v1077 = vpop.f32.mrb[0].mxu0
    %v1078 = vadd.f32 0.0, %v1077
    %v1079 = vpop.f32.mrb[0].mxu0
    %v1080 = vpop.f32.mrb[0].mxu0
    %v1081 = vadd.f32 0.0, %v1080
    %v1082 = vpop.f32.mrb[0].mxu0
    %1083 = vmatprep.mubr.bf16.mxu0 0
    %1084 = vmatmul.mubr.bf16.gmra.mrb[0].mxu0 %v1007
    %v1085 = vpop.f32.mrb[0].mxu0
    %v1086 = vadd.f32 0.0, %v1085
    %v1087 = vpop.f32.mrb[0].mxu0
    %v1088 = vpop.f32.mrb[0].mxu0
    %v1089 = vadd.f32 0.0, %v1088
    %v1090 = vpop.f32.mrb[0].mxu0
    %1091 = vmatprep.mubr.bf16.mxu0 0
    %1092 = vmatmul.mubr.bf16.gmra.mrb[0].mxu0 %v1008
    %v1093 = vpop.f32.mrb[0].mxu0
    %v1094 = vadd.f32 0.0, %v1093
    %v1095 = vpop.f32.mrb[0].mxu0
    %v1096 = vpop.f32.mrb[0].mxu0
    %v1097 = vadd.f32 0.0, %v1096
    %v1098 = vpop.f32.mrb[0].mxu0
    %1099 = vmatprep.mubr.bf16.mxu0 0
    %1100 = vmatmul.mubr.bf16.gmra.mrb[0].mxu0 %v1009
    %v1101 = vpop.f32.mrb[0].mxu0
    %v1102 = vadd.f32 0.0, %v1101
    %v1103 = vpop.f32.mrb[0].mxu0
    %v1104 = vpop.f32.mrb[0].mxu0
    %v1105 = vadd.f32 0.0, %v1104
    %v1106 = vpop.f32.mrb[0].mxu0
    %1107 = vmatprep.mubr.bf16.mxu0 0
    %1108 = vmatmul.mubr.bf16.gmra.mrb[0].mxu0 %v1010
    %v1109 = vpop.f32.mrb[0].mxu0
    %v1110 = vadd.f32 0.0, %v1109
    %v1111 = vpop.f32.mrb[0].mxu0
    %v1112 = vpop.f32.mrb[0].mxu0
    %v1113 = vadd.f32 0.0, %v1112
    %v1114 = vpop.f32.mrb[0].mxu0
    %1115 = vdwg.mxu0
    %v1116 = vpack.c.bf16 %v1057, %v1054
    %v1117 = vpack.c.bf16 %v1065, %v1062
    %v1118 = vpack.c.bf16 %v1073, %v1070
    %v1119 = vpack.c.bf16 %v1081, %v1078
    %v1120 = vpack.c.bf16 %v1089, %v1086
    %v1121 = vpack.c.bf16 %v1097, %v1094
    %v1122 = vpack.c.bf16 %v1105, %v1102
    %v1123 = vpack.c.bf16 %v1113, %v1110
    %v1140 = vunpack.c.l.b16 %v843
    %v1141 = vunpack.c.l.b16 %v844
    %v1142 = vunpack.c.l.b16 %v845
    %v1143 = vunpack.c.l.b16 %v846
    %v1144 = vunpack.c.l.b16 %v847
    %v1145 = vunpack.c.l.b16 %v848
    %v1146 = vunpack.c.l.b16 %v849
    %v1147 = vunpack.c.l.b16 %v850
    %v1148 = vunpack.c.l.b16 %v851
    %v1149 = vunpack.c.l.b16 %v852
    %v1150 = vunpack.c.l.b16 %v853
    %v1151 = vunpack.c.l.b16 %v854
    %v1152 = vunpack.c.l.b16 %v855
    %v1153 = vunpack.c.l.b16 %v856
    %v1154 = vunpack.c.l.b16 %v857
    %v1155 = vunpack.c.l.b16 %v858
    %v1156 = vpack.c.b16 %v1141, %v1140
    %v1157 = vpack.c.b16 %v1143, %v1142
    %v1158 = vpack.c.b16 %v1145, %v1144
    %v1159 = vpack.c.b16 %v1147, %v1146
    %v1160 = vpack.c.b16 %v1149, %v1148
    %v1161 = vpack.c.b16 %v1151, %v1150
    %v1162 = vpack.c.b16 %v1153, %v1152
    %v1163 = vpack.c.b16 %v1155, %v1154
    %v1172 = vmul.bf16 %v1116, %v1156
    %v1173 = vmul.bf16 %v1117, %v1157
    %v1174 = vmul.bf16 %v1118, %v1158
    %v1175 = vmul.bf16 %v1119, %v1159
    %v1176 = vmul.bf16 %v1120, %v1160
    %v1177 = vmul.bf16 %v1121, %v1161
    %v1178 = vmul.bf16 %v1122, %v1162
    %v1179 = vmul.bf16 %v1123, %v1163
    %v1180 = vpack.c.bf16 %v813, %v811
    %v1181 = vpack.c.bf16 %v817, %v815
    %v1182 = vpack.c.bf16 %v821, %v819
    %v1183 = vpack.c.bf16 %v825, %v823
    %v1184 = vpack.c.bf16 %v829, %v827
    %v1185 = vpack.c.bf16 %v833, %v831
    %v1186 = vpack.c.bf16 %v837, %v835
    %v1187 = vpack.c.bf16 %v841, %v839
    %1188 = vmatprep.subr.bf16.mxu0 0
    %1189 = vmatpush1.bf16.msra.mxu0 %v1180
    %1190 = vmatprep.subr.bf16.mxu0 0
    %1191 = vmatpush1.bf16.msra.mxu0 %v1181
    %1192 = vmatprep.subr.bf16.mxu0 0
    %1193 = vmatpush1.bf16.msra.mxu0 %v1182
    %1194 = vmatprep.subr.bf16.mxu0 0
    %1195 = vmatpush1.bf16.msra.mxu0 %v1183
    %1196 = vmatprep.subr.bf16.mxu0 0
    %1197 = vmatpush1.bf16.msra.mxu0 %v1184
    %1198 = vmatprep.subr.bf16.mxu0 0
    %1199 = vmatpush1.bf16.msra.mxu0 %v1185
    %1200 = vmatprep.subr.bf16.mxu0 0
    %1201 = vmatpush1.bf16.msra.mxu0 %v1186
    %1202 = vmatprep.subr.bf16.mxu0 0
    %1203 = vmatpush1.bf16.msra.mxu0 %v1187
    %1204 = vmatprep.subr.bf16.mxu0 0
    %1205 = vmatpush1.bf16.msra.mxu0 0
    %1206 = vmatprep.subr.bf16.mxu0 0
    %1207 = vmatpush1.bf16.msra.mxu0 0
    %1208 = vmatprep.subr.bf16.mxu0 0
    %1209 = vmatpush1.bf16.msra.mxu0 0
    %1210 = vmatprep.subr.bf16.mxu0 0
    %1211 = vmatpush1.bf16.msra.mxu0 0
    %1212 = vmatprep.subr.bf16.mxu0 0
    %1213 = vmatpush1.bf16.msra.mxu0 0
    %1214 = vmatprep.subr.bf16.mxu0 0
    %1215 = vmatpush1.bf16.msra.mxu0 0
    %1216 = vmatprep.subr.bf16.mxu0 0
    %1217 = vmatpush1.bf16.msra.mxu0 0
    %1218 = vmatprep.subr.bf16.mxu0 0
    %1219 = vmatpush1.bf16.msra.mxu0 0
    %1220 = vmatprep.mubr.bf16.mxu0 0
    %1221 = vmatmul.mubr.bf16.gmra.mrb[0].mxu0 %v1172
    %v1222 = vpop.f32.mrb[0].mxu0
    %v1223 = vadd.f32 0.0, %v1222
    %v1224 = vpop.f32.mrb[0].mxu0
    %v1225 = vpop.f32.mrb[0].mxu0
    %v1226 = vadd.f32 0.0, %v1225
    %v1227 = vpop.f32.mrb[0].mxu0
    %1228 = vmatprep.mubr.bf16.mxu0 0
    %1229 = vmatmul.mubr.bf16.gmra.mrb[0].mxu0 %v1173
    %v1230 = vpop.f32.mrb[0].mxu0
    %v1231 = vadd.f32 0.0, %v1230
    %v1232 = vpop.f32.mrb[0].mxu0
    %v1233 = vpop.f32.mrb[0].mxu0
    %v1234 = vadd.f32 0.0, %v1233
    %v1235 = vpop.f32.mrb[0].mxu0
    %1236 = vmatprep.mubr.bf16.mxu0 0
    %1237 = vmatmul.mubr.bf16.gmra.mrb[0].mxu0 %v1174
    %v1238 = vpop.f32.mrb[0].mxu0
    %v1239 = vadd.f32 0.0, %v1238
    %v1240 = vpop.f32.mrb[0].mxu0
    %v1241 = vpop.f32.mrb[0].mxu0
    %v1242 = vadd.f32 0.0, %v1241
    %v1243 = vpop.f32.mrb[0].mxu0
    %1244 = vmatprep.mubr.bf16.mxu0 0
    %1245 = vmatmul.mubr.bf16.gmra.mrb[0].mxu0 %v1175
    %v1246 = vpop.f32.mrb[0].mxu0
    %v1247 = vadd.f32 0.0, %v1246
    %v1248 = vpop.f32.mrb[0].mxu0
    %v1249 = vpop.f32.mrb[0].mxu0
    %v1250 = vadd.f32 0.0, %v1249
    %v1251 = vpop.f32.mrb[0].mxu0
    %1252 = vmatprep.mubr.bf16.mxu0 0
    %1253 = vmatmul.mubr.bf16.gmra.mrb[0].mxu0 %v1176
    %v1254 = vpop.f32.mrb[0].mxu0
    %v1255 = vadd.f32 0.0, %v1254
    %v1256 = vpop.f32.mrb[0].mxu0
    %v1257 = vpop.f32.mrb[0].mxu0
    %v1258 = vadd.f32 0.0, %v1257
    %v1259 = vpop.f32.mrb[0].mxu0
    %1260 = vmatprep.mubr.bf16.mxu0 0
    %1261 = vmatmul.mubr.bf16.gmra.mrb[0].mxu0 %v1177
    %v1262 = vpop.f32.mrb[0].mxu0
    %v1263 = vadd.f32 0.0, %v1262
    %v1264 = vpop.f32.mrb[0].mxu0
    %v1265 = vpop.f32.mrb[0].mxu0
    %v1266 = vadd.f32 0.0, %v1265
    %v1267 = vpop.f32.mrb[0].mxu0
    %1268 = vmatprep.mubr.bf16.mxu0 0
    %1269 = vmatmul.mubr.bf16.gmra.mrb[0].mxu0 %v1178
    %v1270 = vpop.f32.mrb[0].mxu0
    %v1271 = vadd.f32 0.0, %v1270
    %v1272 = vpop.f32.mrb[0].mxu0
    %v1273 = vpop.f32.mrb[0].mxu0
    %v1274 = vadd.f32 0.0, %v1273
    %v1275 = vpop.f32.mrb[0].mxu0
    %1276 = vmatprep.mubr.bf16.mxu0 0
    %1277 = vmatmul.mubr.bf16.gmra.mrb[0].mxu0 %v1179
    %v1278 = vpop.f32.mrb[0].mxu0
    %v1279 = vadd.f32 0.0, %v1278
    %v1280 = vpop.f32.mrb[0].mxu0
    %v1281 = vpop.f32.mrb[0].mxu0
    %v1282 = vadd.f32 0.0, %v1281
    %v1283 = vpop.f32.mrb[0].mxu0
    %1284 = vdwg.mxu0
    %1285 = vmax.xlane.f32.xlu0 %v399
    %v1286 = vpop.xlane.xlu0 %1285
    %1287 = vmax.xlane.f32.xlu0 %v403
    %v1288 = vpop.xlane.xlu0 %1287
    %1289 = vmax.xlane.f32.xlu0 %v409
    %v1290 = vpop.xlane.xlu0 %1289
    %1291 = vmax.xlane.f32.xlu0 %v413
    %v1292 = vpop.xlane.xlu0 %1291
    %1293 = vmax.xlane.f32.xlu0 %v419
    %v1294 = vpop.xlane.xlu0 %1293
    %1295 = vmax.xlane.f32.xlu0 %v423
    %v1296 = vpop.xlane.xlu0 %1295
    %1297 = vmax.xlane.f32.xlu0 %v429
    %v1298 = vpop.xlane.xlu0 %1297
    %1299 = vmax.xlane.f32.xlu0 %v433
    %v1300 = vpop.xlane.xlu0 %1299
    %1301 = vmax.xlane.f32.xlu0 %v439
    %v1302 = vpop.xlane.xlu0 %1301
    %1303 = vmax.xlane.f32.xlu0 %v443
    %v1304 = vpop.xlane.xlu0 %1303
    %1305 = vmax.xlane.f32.xlu0 %v449
    %v1306 = vpop.xlane.xlu0 %1305
    %1307 = vmax.xlane.f32.xlu0 %v453
    %v1308 = vpop.xlane.xlu0 %1307
    %1309 = vmax.xlane.f32.xlu0 %v459
    %v1310 = vpop.xlane.xlu0 %1309
    %1311 = vmax.xlane.f32.xlu0 %v463
    %v1312 = vpop.xlane.xlu0 %1311
    %1313 = vmax.xlane.f32.xlu0 %v469
    %v1314 = vpop.xlane.xlu0 %1313
    %1315 = vmax.xlane.f32.xlu0 %v473
    %v1316 = vpop.xlane.xlu0 %1315
    %v1317 = vsub.f32 %v399, %v1286
    %v1318 = vsub.f32 %v403, %v1288
    %v1319 = vsub.f32 %v409, %v1290
    %v1320 = vsub.f32 %v413, %v1292
    %v1321 = vsub.f32 %v419, %v1294
    %v1322 = vsub.f32 %v423, %v1296
    %v1323 = vsub.f32 %v429, %v1298
    %v1324 = vsub.f32 %v433, %v1300
    %v1325 = vsub.f32 %v439, %v1302
    %v1326 = vsub.f32 %v443, %v1304
    %v1327 = vsub.f32 %v449, %v1306
    %v1328 = vsub.f32 %v453, %v1308
    %v1329 = vsub.f32 %v459, %v1310
    %v1330 = vsub.f32 %v463, %v1312
    %v1331 = vsub.f32 %v469, %v1314
    %v1332 = vsub.f32 %v473, %v1316
    %v1333 = vmul.f32 %v1317, 1.442695
    %v1334 = vpow.pop %v1333
    %v1335 = vmul.f32 %v1318, 1.442695
    %v1336 = vpow.pop %v1335
    %v1337 = vmul.f32 %v1319, 1.442695
    %v1338 = vpow.pop %v1337
    %v1339 = vmul.f32 %v1320, 1.442695
    %v1340 = vpow.pop %v1339
    %v1341 = vmul.f32 %v1321, 1.442695
    %v1342 = vpow.pop %v1341
    %v1343 = vmul.f32 %v1322, 1.442695
    %v1344 = vpow.pop %v1343
    %v1345 = vmul.f32 %v1323, 1.442695
    %v1346 = vpow.pop %v1345
    %v1347 = vmul.f32 %v1324, 1.442695
    %v1348 = vpow.pop %v1347
    %v1349 = vmul.f32 %v1325, 1.442695
    %v1350 = vpow.pop %v1349
    %v1351 = vmul.f32 %v1326, 1.442695
    %v1352 = vpow.pop %v1351
    %v1353 = vmul.f32 %v1327, 1.442695
    %v1354 = vpow.pop %v1353
    %v1355 = vmul.f32 %v1328, 1.442695
    %v1356 = vpow.pop %v1355
    %v1357 = vmul.f32 %v1329, 1.442695
    %v1358 = vpow.pop %v1357
    %v1359 = vmul.f32 %v1330, 1.442695
    %v1360 = vpow.pop %v1359
    %v1361 = vmul.f32 %v1331, 1.442695
    %v1362 = vpow.pop %v1361
    %v1363 = vmul.f32 %v1332, 1.442695
    %v1364 = vpow.pop %v1363
    %1365 = vadd.xlane.f32.xlu0 %v1334
    %v1366 = vpop.xlane.xlu0 %1365
    %1367 = vadd.xlane.f32.xlu0 %v1336
    %v1368 = vpop.xlane.xlu0 %1367
    %1369 = vadd.xlane.f32.xlu0 %v1338
    %v1370 = vpop.xlane.xlu0 %1369
    %1371 = vadd.xlane.f32.xlu0 %v1340
    %v1372 = vpop.xlane.xlu0 %1371
    %1373 = vadd.xlane.f32.xlu0 %v1342
    %v1374 = vpop.xlane.xlu0 %1373
    %1375 = vadd.xlane.f32.xlu0 %v1344
    %v1376 = vpop.xlane.xlu0 %1375
    %1377 = vadd.xlane.f32.xlu0 %v1346
    %v1378 = vpop.xlane.xlu0 %1377
    %1379 = vadd.xlane.f32.xlu0 %v1348
    %v1380 = vpop.xlane.xlu0 %1379
    %1381 = vadd.xlane.f32.xlu0 %v1350
    %v1382 = vpop.xlane.xlu0 %1381
    %1383 = vadd.xlane.f32.xlu0 %v1352
    %v1384 = vpop.xlane.xlu0 %1383
    %1385 = vadd.xlane.f32.xlu0 %v1354
    %v1386 = vpop.xlane.xlu0 %1385
    %1387 = vadd.xlane.f32.xlu0 %v1356
    %v1388 = vpop.xlane.xlu0 %1387
    %1389 = vadd.xlane.f32.xlu0 %v1358
    %v1390 = vpop.xlane.xlu0 %1389
    %1391 = vadd.xlane.f32.xlu0 %v1360
    %v1392 = vpop.xlane.xlu0 %1391
    %1393 = vadd.xlane.f32.xlu0 %v1362
    %v1394 = vpop.xlane.xlu0 %1393
    %1395 = vadd.xlane.f32.xlu0 %v1364
    %v1396 = vpop.xlane.xlu0 %1395
    %v1397 = vrcp.pop %v1366
    %v1398 = vrcp.pop %v1368
    %v1399 = vrcp.pop %v1370
    %v1400 = vrcp.pop %v1372
    %v1401 = vrcp.pop %v1374
    %v1402 = vrcp.pop %v1376
    %v1403 = vrcp.pop %v1378
    %v1404 = vrcp.pop %v1380
    %v1405 = vrcp.pop %v1382
    %v1406 = vrcp.pop %v1384
    %v1407 = vrcp.pop %v1386
    %v1408 = vrcp.pop %v1388
    %v1409 = vrcp.pop %v1390
    %v1410 = vrcp.pop %v1392
    %v1411 = vrcp.pop %v1394
    %v1412 = vrcp.pop %v1396
    %v1413 = vmul.f32 %v1334, %v1397
    %v1414 = vmul.f32 %v1336, %v1398
    %v1415 = vmul.f32 %v1338, %v1399
    %v1416 = vmul.f32 %v1340, %v1400
    %v1417 = vmul.f32 %v1342, %v1401
    %v1418 = vmul.f32 %v1344, %v1402
    %v1419 = vmul.f32 %v1346, %v1403
    %v1420 = vmul.f32 %v1348, %v1404
    %v1421 = vmul.f32 %v1350, %v1405
    %v1422 = vmul.f32 %v1352, %v1406
    %v1423 = vmul.f32 %v1354, %v1407
    %v1424 = vmul.f32 %v1356, %v1408
    %v1425 = vmul.f32 %v1358, %v1409
    %v1426 = vmul.f32 %v1360, %v1410
    %v1427 = vmul.f32 %v1362, %v1411
    %v1428 = vmul.f32 %v1364, %v1412
    %v1429 = vpack.c.bf16 %v483, %v479
    %v1430 = vpack.c.bf16 %v493, %v489
    %v1431 = vpack.c.bf16 %v503, %v499
    %v1432 = vpack.c.bf16 %v513, %v509
    %v1433 = vpack.c.bf16 %v523, %v519
    %v1434 = vpack.c.bf16 %v533, %v529
    %v1435 = vpack.c.bf16 %v543, %v539
    %v1436 = vpack.c.bf16 %v553, %v549
    %v1437 = vpack.c.bf16 %v1414, %v1413
    %v1438 = vpack.c.bf16 %v1416, %v1415
    %v1439 = vpack.c.bf16 %v1418, %v1417
    %v1440 = vpack.c.bf16 %v1420, %v1419
    %v1441 = vpack.c.bf16 %v1422, %v1421
    %v1442 = vpack.c.bf16 %v1424, %v1423
    %v1443 = vpack.c.bf16 %v1426, %v1425
    %v1444 = vpack.c.bf16 %v1428, %v1427
    %1445 = vmatprep.subr.bf16.mxu0 0
    %1446 = vmatpush1.bf16.xpose.msra.mxu0 %v1437
    %1447 = vmatprep.subr.bf16.mxu0 0
    %1448 = vmatpush1.bf16.xpose.msra.mxu0 %v1438
    %1449 = vmatprep.subr.bf16.mxu0 0
    %1450 = vmatpush1.bf16.xpose.msra.mxu0 %v1439
    %1451 = vmatprep.subr.bf16.mxu0 0
    %1452 = vmatpush1.bf16.xpose.msra.mxu0 %v1440
    %1453 = vmatprep.subr.bf16.mxu0 0
    %1454 = vmatpush1.bf16.xpose.msra.mxu0 %v1441
    %1455 = vmatprep.subr.bf16.mxu0 0
    %1456 = vmatpush1.bf16.xpose.msra.mxu0 %v1442
    %1457 = vmatprep.subr.bf16.mxu0 0
    %1458 = vmatpush1.bf16.xpose.msra.mxu0 %v1443
    %1459 = vmatprep.subr.bf16.mxu0 0
    %1460 = vmatpush1.bf16.xpose.msra.mxu0 %v1444
    %1461 = vmatprep.subr.bf16.mxu0 0
    %1462 = vmatpush1.bf16.xpose.msra.mxu0 0
    %1463 = vmatprep.subr.bf16.mxu0 0
    %1464 = vmatpush1.bf16.xpose.msra.mxu0 0
    %1465 = vmatprep.subr.bf16.mxu0 0
    %1466 = vmatpush1.bf16.xpose.msra.mxu0 0
    %1467 = vmatprep.subr.bf16.mxu0 0
    %1468 = vmatpush1.bf16.xpose.msra.mxu0 0
    %1469 = vmatprep.subr.bf16.mxu0 0
    %1470 = vmatpush1.bf16.xpose.msra.mxu0 0
    %1471 = vmatprep.subr.bf16.mxu0 0
    %1472 = vmatpush1.bf16.xpose.msra.mxu0 0
    %1473 = vmatprep.subr.bf16.mxu0 0
    %1474 = vmatpush1.bf16.xpose.msra.mxu0 0
    %1475 = vmatprep.subr.bf16.mxu0 0
    %1476 = vmatpush1.bf16.xpose.msra.mxu0 0
    %1477 = vmatprep.mubr.bf16.mxu0 0
    %1478 = vmatmul.mubr.bf16.gmra.mrb[0].mxu0 %v1429
    %v1479 = vpop.f32.mrb[0].mxu0
    %v1480 = vadd.f32 0.0, %v1479
    %v1481 = vpop.f32.mrb[0].mxu0
    %v1482 = vpop.f32.mrb[0].mxu0
    %v1483 = vadd.f32 0.0, %v1482
    %v1484 = vpop.f32.mrb[0].mxu0
    %1485 = vmatprep.mubr.bf16.mxu0 0
    %1486 = vmatmul.mubr.bf16.gmra.mrb[0].mxu0 %v1430
    %v1487 = vpop.f32.mrb[0].mxu0
    %v1488 = vadd.f32 0.0, %v1487
    %v1489 = vpop.f32.mrb[0].mxu0
    %v1490 = vpop.f32.mrb[0].mxu0
    %v1491 = vadd.f32 0.0, %v1490
    %v1492 = vpop.f32.mrb[0].mxu0
    %1493 = vmatprep.mubr.bf16.mxu0 0
    %1494 = vmatmul.mubr.bf16.gmra.mrb[0].mxu0 %v1431
    %v1495 = vpop.f32.mrb[0].mxu0
    %v1496 = vadd.f32 0.0, %v1495
    %v1497 = vpop.f32.mrb[0].mxu0
    %v1498 = vpop.f32.mrb[0].mxu0
    %v1499 = vadd.f32 0.0, %v1498
    %v1500 = vpop.f32.mrb[0].mxu0
    %1501 = vmatprep.mubr.bf16.mxu0 0
    %1502 = vmatmul.mubr.bf16.gmra.mrb[0].mxu0 %v1432
    %v1503 = vpop.f32.mrb[0].mxu0
    %v1504 = vadd.f32 0.0, %v1503
    %v1505 = vpop.f32.mrb[0].mxu0
    %v1506 = vpop.f32.mrb[0].mxu0
    %v1507 = vadd.f32 0.0, %v1506
    %v1508 = vpop.f32.mrb[0].mxu0
    %1509 = vmatprep.mubr.bf16.mxu0 0
    %1510 = vmatmul.mubr.bf16.gmra.mrb[0].mxu0 %v1433
    %v1511 = vpop.f32.mrb[0].mxu0
    %v1512 = vadd.f32 0.0, %v1511
    %v1513 = vpop.f32.mrb[0].mxu0
    %v1514 = vpop.f32.mrb[0].mxu0
    %v1515 = vadd.f32 0.0, %v1514
    %v1516 = vpop.f32.mrb[0].mxu0
    %1517 = vmatprep.mubr.bf16.mxu0 0
    %1518 = vmatmul.mubr.bf16.gmra.mrb[0].mxu0 %v1434
    %v1519 = vpop.f32.mrb[0].mxu0
    %v1520 = vadd.f32 0.0, %v1519
    %v1521 = vpop.f32.mrb[0].mxu0
    %v1522 = vpop.f32.mrb[0].mxu0
    %v1523 = vadd.f32 0.0, %v1522
    %v1524 = vpop.f32.mrb[0].mxu0
    %1525 = vmatprep.mubr.bf16.mxu0 0
    %1526 = vmatmul.mubr.bf16.gmra.mrb[0].mxu0 %v1435
    %v1527 = vpop.f32.mrb[0].mxu0
    %v1528 = vadd.f32 0.0, %v1527
    %v1529 = vpop.f32.mrb[0].mxu0
    %v1530 = vpop.f32.mrb[0].mxu0
    %v1531 = vadd.f32 0.0, %v1530
    %v1532 = vpop.f32.mrb[0].mxu0
    %1533 = vmatprep.mubr.bf16.mxu0 0
    %1534 = vmatmul.mubr.bf16.gmra.mrb[0].mxu0 %v1436
    %v1535 = vpop.f32.mrb[0].mxu0
    %v1536 = vadd.f32 0.0, %v1535
    %v1537 = vpop.f32.mrb[0].mxu0
    %v1538 = vpop.f32.mrb[0].mxu0
    %v1539 = vadd.f32 0.0, %v1538
    %v1540 = vpop.f32.mrb[0].mxu0
    %1541 = vdwg.mxu0
    %v1542 = vpack.c.bf16 %v1483, %v1480
    %v1543 = vpack.c.bf16 %v1491, %v1488
    %v1544 = vpack.c.bf16 %v1499, %v1496
    %v1545 = vpack.c.bf16 %v1507, %v1504
    %v1546 = vpack.c.bf16 %v1515, %v1512
    %v1547 = vpack.c.bf16 %v1523, %v1520
    %v1548 = vpack.c.bf16 %v1531, %v1528
    %v1549 = vpack.c.bf16 %v1539, %v1536
    %v1550 = vmul.bf16 %v1542, %v1156
    %v1551 = vmul.bf16 %v1543, %v1157
    %v1552 = vmul.bf16 %v1544, %v1158
    %v1553 = vmul.bf16 %v1545, %v1159
    %v1554 = vmul.bf16 %v1546, %v1160
    %v1555 = vmul.bf16 %v1547, %v1161
    %v1556 = vmul.bf16 %v1548, %v1162
    %v1557 = vmul.bf16 %v1549, %v1163
    %v1558 = vpack.c.bf16 %v814, %v812
    %v1559 = vpack.c.bf16 %v818, %v816
    %v1560 = vpack.c.bf16 %v822, %v820
    %v1561 = vpack.c.bf16 %v826, %v824
    %v1562 = vpack.c.bf16 %v830, %v828
    %v1563 = vpack.c.bf16 %v834, %v832
    %v1564 = vpack.c.bf16 %v838, %v836
    %v1565 = vpack.c.bf16 %v842, %v840
    %1566 = vmatprep.subr.bf16.mxu0 0
    %1567 = vmatpush1.bf16.msra.mxu0 %v1558
    %1568 = vmatprep.subr.bf16.mxu0 0
    %1569 = vmatpush1.bf16.msra.mxu0 %v1559
    %1570 = vmatprep.subr.bf16.mxu0 0
    %1571 = vmatpush1.bf16.msra.mxu0 %v1560
    %1572 = vmatprep.subr.bf16.mxu0 0
    %1573 = vmatpush1.bf16.msra.mxu0 %v1561
    %1574 = vmatprep.subr.bf16.mxu0 0
    %1575 = vmatpush1.bf16.msra.mxu0 %v1562
    %1576 = vmatprep.subr.bf16.mxu0 0
    %1577 = vmatpush1.bf16.msra.mxu0 %v1563
    %1578 = vmatprep.subr.bf16.mxu0 0
    %1579 = vmatpush1.bf16.msra.mxu0 %v1564
    %1580 = vmatprep.subr.bf16.mxu0 0
    %1581 = vmatpush1.bf16.msra.mxu0 %v1565
    %1582 = vmatprep.subr.bf16.mxu0 0
    %1583 = vmatpush1.bf16.msra.mxu0 0
    %1584 = vmatprep.subr.bf16.mxu0 0
    %1585 = vmatpush1.bf16.msra.mxu0 0
    %1586 = vmatprep.subr.bf16.mxu0 0
    %1587 = vmatpush1.bf16.msra.mxu0 0
    %1588 = vmatprep.subr.bf16.mxu0 0
    %1589 = vmatpush1.bf16.msra.mxu0 0
    %1590 = vmatprep.subr.bf16.mxu0 0
    %1591 = vmatpush1.bf16.msra.mxu0 0
    %1592 = vmatprep.subr.bf16.mxu0 0
    %1593 = vmatpush1.bf16.msra.mxu0 0
    %1594 = vmatprep.subr.bf16.mxu0 0
    %1595 = vmatpush1.bf16.msra.mxu0 0
    %1596 = vmatprep.subr.bf16.mxu0 0
    %1597 = vmatpush1.bf16.msra.mxu0 0
    %1598 = vmatprep.mubr.bf16.mxu0 0
    %1599 = vmatmul.mubr.bf16.gmra.mrb[0].mxu0 %v1550
    %v1600 = vpop.f32.mrb[0].mxu0
    %v1601 = vadd.f32 0.0, %v1600
    %v1602 = vpop.f32.mrb[0].mxu0
    %v1603 = vpop.f32.mrb[0].mxu0
    %v1604 = vadd.f32 0.0, %v1603
    %v1605 = vpop.f32.mrb[0].mxu0
    %1606 = vmatprep.mubr.bf16.mxu0 0
    %1607 = vmatmul.mubr.bf16.gmra.mrb[0].mxu0 %v1551
    %v1608 = vpop.f32.mrb[0].mxu0
    %v1609 = vadd.f32 0.0, %v1608
    %v1610 = vpop.f32.mrb[0].mxu0
    %v1611 = vpop.f32.mrb[0].mxu0
    %v1612 = vadd.f32 0.0, %v1611
    %v1613 = vpop.f32.mrb[0].mxu0
    %1614 = vmatprep.mubr.bf16.mxu0 0
    %1615 = vmatmul.mubr.bf16.gmra.mrb[0].mxu0 %v1552
    %v1616 = vpop.f32.mrb[0].mxu0
    %v1617 = vadd.f32 0.0, %v1616
    %v1618 = vpop.f32.mrb[0].mxu0
    %v1619 = vpop.f32.mrb[0].mxu0
    %v1620 = vadd.f32 0.0, %v1619
    %v1621 = vpop.f32.mrb[0].mxu0
    %1622 = vmatprep.mubr.bf16.mxu0 0
    %1623 = vmatmul.mubr.bf16.gmra.mrb[0].mxu0 %v1553
    %v1624 = vpop.f32.mrb[0].mxu0
    %v1625 = vadd.f32 0.0, %v1624
    %v1626 = vpop.f32.mrb[0].mxu0
    %v1627 = vpop.f32.mrb[0].mxu0
    %v1628 = vadd.f32 0.0, %v1627
    %v1629 = vpop.f32.mrb[0].mxu0
    %1630 = vmatprep.mubr.bf16.mxu0 0
    %1631 = vmatmul.mubr.bf16.gmra.mrb[0].mxu0 %v1554
    %v1632 = vpop.f32.mrb[0].mxu0
    %v1633 = vadd.f32 0.0, %v1632
    %v1634 = vpop.f32.mrb[0].mxu0
    %v1635 = vpop.f32.mrb[0].mxu0
    %v1636 = vadd.f32 0.0, %v1635
    %v1637 = vpop.f32.mrb[0].mxu0
    %1638 = vmatprep.mubr.bf16.mxu0 0
    %1639 = vmatmul.mubr.bf16.gmra.mrb[0].mxu0 %v1555
    %v1640 = vpop.f32.mrb[0].mxu0
    %v1641 = vadd.f32 0.0, %v1640
    %v1642 = vpop.f32.mrb[0].mxu0
    %v1643 = vpop.f32.mrb[0].mxu0
    %v1644 = vadd.f32 0.0, %v1643
    %v1645 = vpop.f32.mrb[0].mxu0
    %1646 = vmatprep.mubr.bf16.mxu0 0
    %1647 = vmatmul.mubr.bf16.gmra.mrb[0].mxu0 %v1556
    %v1648 = vpop.f32.mrb[0].mxu0
    %v1649 = vadd.f32 0.0, %v1648
    %v1650 = vpop.f32.mrb[0].mxu0
    %v1651 = vpop.f32.mrb[0].mxu0
    %v1652 = vadd.f32 0.0, %v1651
    %v1653 = vpop.f32.mrb[0].mxu0
    %1654 = vmatprep.mubr.bf16.mxu0 0
    %1655 = vmatmul.mubr.bf16.gmra.mrb[0].mxu0 %v1557
    %v1656 = vpop.f32.mrb[0].mxu0
    %v1657 = vadd.f32 0.0, %v1656
    %v1658 = vpop.f32.mrb[0].mxu0
    %v1659 = vpop.f32.mrb[0].mxu0
    %v1660 = vadd.f32 0.0, %v1659
    %v1661 = vpop.f32.mrb[0].mxu0
    %1662 = vdwg.mxu0
    %v1663 = vld [vmem:[%s3] sm:$0xf]
    %v1664 = vld [vmem:[%s3 + $0x4] sm:$0xf]
    %v1665 = vld [vmem:[%s3 + $0x8] sm:$0xf]
    %v1666 = vld [vmem:[%s3 + $0xc] sm:$0xf]
    %v1667 = vpack.c.bf16 %v1226, %v1223
    %v1668 = vpack.c.bf16 %v1604, %v1601
    %v1669 = vpack.c.bf16 %v1234, %v1231
    %v1670 = vpack.c.bf16 %v1612, %v1609
    %v1671 = vpack.c.bf16 %v1242, %v1239
    %v1672 = vpack.c.bf16 %v1620, %v1617
    %v1673 = vpack.c.bf16 %v1250, %v1247
    %v1674 = vpack.c.bf16 %v1628, %v1625
    %v1675 = vpack.c.bf16 %v1258, %v1255
    %v1676 = vpack.c.bf16 %v1636, %v1633
    %v1677 = vpack.c.bf16 %v1266, %v1263
    %v1678 = vpack.c.bf16 %v1644, %v1641
    %v1679 = vpack.c.bf16 %v1274, %v1271
    %v1680 = vpack.c.bf16 %v1652, %v1649
    %v1681 = vpack.c.bf16 %v1282, %v1279
    %v1682 = vpack.c.bf16 %v1660, %v1657
    %v1687 = vunpack.c.l.b16 %v1663
    %v1688 = vunpack.c.l.b16 %v1664
    %v1689 = vunpack.c.l.b16 %v1665
    %v1690 = vunpack.c.l.b16 %v1666
    %v1691 = vpack.c.b16 %v1688, %v1687
    %v1692 = vpack.c.b16 %v1690, %v1689
    %1695 = vmatprep.subr.bf16.mxu0 %v1668
    %1696 = vmatpush1.bf16.msra.mxu0 %v1667
    %1697 = vmatprep.subr.bf16.mxu0 %v1670
    %1698 = vmatpush1.bf16.msra.mxu0 %v1669
    %1699 = vmatprep.subr.bf16.mxu0 %v1672
    %1700 = vmatpush1.bf16.msra.mxu0 %v1671
    %1701 = vmatprep.subr.bf16.mxu0 %v1674
    %1702 = vmatpush1.bf16.msra.mxu0 %v1673
    %1703 = vmatprep.subr.bf16.mxu0 %v1676
    %1704 = vmatpush1.bf16.msra.mxu0 %v1675
    %1705 = vmatprep.subr.bf16.mxu0 %v1678
    %1706 = vmatpush1.bf16.msra.mxu0 %v1677
    %1707 = vmatprep.subr.bf16.mxu0 %v1680
    %1708 = vmatpush1.bf16.msra.mxu0 %v1679
    %1709 = vmatprep.subr.bf16.mxu0 %v1682
    %1710 = vmatpush1.bf16.msra.mxu0 %v1681
    %1711 = vmatprep.subr.bf16.mxu0 0
    %1712 = vmatpush1.bf16.msra.mxu0 0
    %1713 = vmatprep.subr.bf16.mxu0 0
    %1714 = vmatpush1.bf16.msra.mxu0 0
    %1715 = vmatprep.subr.bf16.mxu0 0
    %1716 = vmatpush1.bf16.msra.mxu0 0
    %1717 = vmatprep.subr.bf16.mxu0 0
    %1718 = vmatpush1.bf16.msra.mxu0 0
    %1719 = vmatprep.subr.bf16.mxu0 0
    %1720 = vmatpush1.bf16.msra.mxu0 0
    %1721 = vmatprep.subr.bf16.mxu0 0
    %1722 = vmatpush1.bf16.msra.mxu0 0
    %1723 = vmatprep.subr.bf16.mxu0 0
    %1724 = vmatpush1.bf16.msra.mxu0 0
    %1725 = vmatprep.subr.bf16.mxu0 0
    %1726 = vmatpush1.bf16.msra.mxu0 0
    %1727 = vmatprep.mubr.bf16.mxu0 0
    %1728 = vmatmul.mubr.bf16.gmra.mrb[0].mxu0 %v1691
    %v1729 = vpop.f32.mrb[0].mxu0
    %v1730 = vadd.f32 0.0, %v1729
    %v1731 = vpop.f32.mrb[0].mxu0
    %v1732 = vadd.f32 0.0, %v1731
    %v1733 = vpop.f32.mrb[0].mxu0
    %v1734 = vadd.f32 0.0, %v1733
    %v1735 = vpop.f32.mrb[0].mxu0
    %v1736 = vadd.f32 0.0, %v1735
    %1737 = vmatprep.mubr.bf16.mxu0 0
    %1738 = vmatmul.mubr.bf16.gmra.mrb[0].mxu0 %v1692
    %v1739 = vpop.f32.mrb[0].mxu0
    %v1740 = vadd.f32 0.0, %v1739
    %v1741 = vpop.f32.mrb[0].mxu0
    %v1742 = vadd.f32 0.0, %v1741
    %v1743 = vpop.f32.mrb[0].mxu0
    %v1744 = vadd.f32 0.0, %v1743
    %v1745 = vpop.f32.mrb[0].mxu0
    %v1746 = vadd.f32 0.0, %v1745
    %1747 = vdwg.mxu0
    %v1748 = vld [vmem:[%s4] sm:$0xff]
    %v1749 = vld [vmem:[%s4 + $0x8] sm:$0xff]
    %v1750 = vld [vmem:[%s4 + $0x10] sm:$0xff]
    %v1751 = vld [vmem:[%s4 + $0x18] sm:$0xff]
    %v1752 = vld [vmem:[%s5] sm:$0xff]
    %v1753 = vld [vmem:[%s5 + $0x8] sm:$0xff]
    %v1754 = vld [vmem:[%s5 + $0x10] sm:$0xff]
    %v1755 = vld [vmem:[%s5 + $0x18] sm:$0xff]
    %v1756 = vld [vmem:[%s6] sm:$0xff]
    %v1757 = vld [vmem:[%s6 + $0x8] sm:$0xff]
    %v1758 = vld [vmem:[%s6 + $0x10] sm:$0xff]
    %v1759 = vld [vmem:[%s6 + $0x18] sm:$0xff]
    %vm1760 = vcmask 7168
    %v1761 = vsel %vm1760, %v1748, 0.0
    %v1762 = vsel %vm1760, %v1749, 0.0
    %v1763 = vadd.f32 %v1761, %v1762
    %v1764 = vsel %vm1760, %v1750, 0.0
    %v1765 = vadd.f32 %v1763, %v1764
    %v1766 = vsel %vm1760, %v1751, 0.0
    %v1767 = vadd.f32 %v1765, %v1766
    %1768 = vadd.xlane.f32.xlu0 %v1767
    %v1769 = vpop.xlane.xlu0 %1768
    %v1770 = vrot.slane %v1769, 4
    %v1771 = vadd.f32 %v1769, %v1770
    %v1772 = vrot.slane %v1771, 2
    %v1773 = vadd.f32 %v1771, %v1772
    %v1774 = vrot.slane %v1773, 1
    %v1775 = vadd.f32 %v1773, %v1774
    %s1776 = vtos %v1775
    %v1777 = vmul.f32 %v1748, %v1748
    %v1778 = vmul.f32 %v1749, %v1749
    %v1779 = vmul.f32 %v1750, %v1750
    %v1780 = vmul.f32 %v1751, %v1751
    %v1781 = vsel %vm1760, %v1777, 0.0
    %v1782 = vsel %vm1760, %v1778, 0.0
    %v1783 = vadd.f32 %v1781, %v1782
    %v1784 = vsel %vm1760, %v1779, 0.0
    %v1785 = vadd.f32 %v1783, %v1784
    %v1786 = vsel %vm1760, %v1780, 0.0
    %v1787 = vadd.f32 %v1785, %v1786
    %1788 = vadd.xlane.f32.xlu0 %v1787
    %v1789 = vpop.xlane.xlu0 %1788
    %v1790 = vrot.slane %v1789, 4
    %v1791 = vadd.f32 %v1789, %v1790
    %v1792 = vrot.slane %v1791, 2
    %v1793 = vadd.f32 %v1791, %v1792
    %v1794 = vrot.slane %v1793, 1
    %v1795 = vadd.f32 %v1793, %v1794
    %s1796 = vtos %v1795
    %1797 = vadd.xlane.f32.xlu0 %v1730
    %v1798 = vpop.xlane.xlu0 %1797
    %1799 = vadd.xlane.f32.xlu0 %v1734
    %v1800 = vpop.xlane.xlu0 %1799
    %1801 = vadd.xlane.f32.xlu0 %v1740
    %v1802 = vpop.xlane.xlu0 %1801
    %1803 = vadd.xlane.f32.xlu0 %v1744
    %v1804 = vpop.xlane.xlu0 %1803
    %v1805 = vmul.f32 %v1730, %v1730
    %v1806 = vmul.f32 %v1734, %v1734
    %v1807 = vmul.f32 %v1740, %v1740
    %v1808 = vmul.f32 %v1744, %v1744
    %1809 = vadd.xlane.f32.xlu0 %v1805
    %v1810 = vpop.xlane.xlu0 %1809
    %1811 = vadd.xlane.f32.xlu0 %v1806
    %v1812 = vpop.xlane.xlu0 %1811
    %1813 = vadd.xlane.f32.xlu0 %v1807
    %v1814 = vpop.xlane.xlu0 %1813
    %1815 = vadd.xlane.f32.xlu0 %v1808
    %v1816 = vpop.xlane.xlu0 %1815
    %v1817 = vsel %vm1760, %v1798, 0.0
    %v1818 = vsel %vm1760, %v1800, 0.0
    %v1819 = vadd.f32 %v1817, %v1818
    %v1820 = vsel %vm1760, %v1802, 0.0
    %v1821 = vadd.f32 %v1819, %v1820
    %v1822 = vsel %vm1760, %v1804, 0.0
    %v1823 = vadd.f32 %v1821, %v1822
    %1824 = vadd.xlane.f32.xlu0 %v1823
    %v1825 = vpop.xlane.xlu0 %1824
    %v1826 = vrot.slane %v1825, 4
    %v1827 = vadd.f32 %v1825, %v1826
    %v1828 = vrot.slane %v1827, 2
    %v1829 = vadd.f32 %v1827, %v1828
    %v1830 = vrot.slane %v1829, 1
    %v1831 = vadd.f32 %v1829, %v1830
    %s1832 = vtos %v1831
    %s1833 = smul.f32 %s1776, 128.0
    %s1834 = sadd.f32 %s1832, %s1833
    %v1835 = vsel %vm1760, %v1810, 0.0
    %v1836 = vsel %vm1760, %v1812, 0.0
    %v1837 = vadd.f32 %v1835, %v1836
    %v1838 = vsel %vm1760, %v1814, 0.0
    %v1839 = vadd.f32 %v1837, %v1838
    %v1840 = vsel %vm1760, %v1816, 0.0
    %v1841 = vadd.f32 %v1839, %v1840
    %1842 = vadd.xlane.f32.xlu0 %v1841
    %v1843 = vpop.xlane.xlu0 %1842
    %v1844 = vrot.slane %v1843, 4
    %v1845 = vadd.f32 %v1843, %v1844
    %v1846 = vrot.slane %v1845, 2
    %v1847 = vadd.f32 %v1845, %v1846
    %v1848 = vrot.slane %v1847, 1
    %v1849 = vadd.f32 %v1847, %v1848
    %s1850 = vtos %v1849
    %v1851 = vmul.f32 %v1748, %v1798
    %v1852 = vmul.f32 %v1749, %v1800
    %v1853 = vmul.f32 %v1750, %v1802
    %v1854 = vmul.f32 %v1751, %v1804
    %v1855 = vsel %vm1760, %v1851, 0.0
    %v1856 = vsel %vm1760, %v1852, 0.0
    %v1857 = vadd.f32 %v1855, %v1856
    %v1858 = vsel %vm1760, %v1853, 0.0
    %v1859 = vadd.f32 %v1857, %v1858
    %v1860 = vsel %vm1760, %v1854, 0.0
    %v1861 = vadd.f32 %v1859, %v1860
    %1862 = vadd.xlane.f32.xlu0 %v1861
    %v1863 = vpop.xlane.xlu0 %1862
    %v1864 = vrot.slane %v1863, 4
    %v1865 = vadd.f32 %v1863, %v1864
    %v1866 = vrot.slane %v1865, 2
    %v1867 = vadd.f32 %v1865, %v1866
    %v1868 = vrot.slane %v1867, 1
    %v1869 = vadd.f32 %v1867, %v1868
    %s1870 = vtos %v1869
    %s1871 = smul.f32 %s1870, 2.0
    %s1872 = sadd.f32 %s1850, %s1871
    %s1873 = smul.f32 %s1796, 128.0
    %s1874 = sadd.f32 %s1872, %s1873
    %v1875 = vrcp.pop 4096.0
    %s1876 = vtos %v1875
    %s1877 = smul.f32 %s1834, %s1876
    %v1878 = vrcp.pop 4096.0
    %s1879 = vtos %v1878
    %s1880 = smul.f32 %s1874, %s1879
    %s1881 = smul.f32 %s1877, %s1877
    %s1882 = ssub.f32 %s1880, %s1881
    %s1883 = smax.f32 %s1882, 0.0
    %s1884 = sadd.f32 %s1883, 1e-05
    %v1885 = vstv %s1884
    %v1886 = vrsqrt.pop %v1885
    %s1887 = vtos %v1886
    %v1888 = vstv %s1887
    %v1889 = vmul.f32 %v1752, %v1888
    %v1890 = vmul.f32 %v1753, %v1888
    %v1891 = vmul.f32 %v1754, %v1888
    %v1892 = vmul.f32 %v1755, %v1888
    %v1893 = vstv %s1877
    %v1894 = vsub.f32 %v1748, %v1893
    %v1895 = vsub.f32 %v1749, %v1893
    %v1896 = vsub.f32 %v1750, %v1893
    %v1897 = vsub.f32 %v1751, %v1893
    %v1898 = vmul.f32 %v1894, %v1889
    %v1899 = vmul.f32 %v1895, %v1890
    %v1900 = vmul.f32 %v1896, %v1891
    %v1901 = vmul.f32 %v1897, %v1892
    %v1902 = vadd.f32 %v1756, %v1898
    %v1903 = vadd.f32 %v1757, %v1899
    %v1904 = vadd.f32 %v1758, %v1900
    %v1905 = vadd.f32 %v1759, %v1901
    %1907 = vset.pattern.permute.xlu0 0
    %1908 = vperm.xlu0 %1907, %v1889
    %v1909 = vpop.permute.xlu0 %1908
    %1912 = vset.pattern.permute.xlu0 0
    %1913 = vperm.xlu0 %1912, %v1890
    %v1914 = vpop.permute.xlu0 %1913
    %1917 = vset.pattern.permute.xlu0 0
    %1918 = vperm.xlu0 %1917, %v1891
    %v1919 = vpop.permute.xlu0 %1918
    %1922 = vset.pattern.permute.xlu0 0
    %1923 = vperm.xlu0 %1922, %v1892
    %v1924 = vpop.permute.xlu0 %1923
    %v1926 = vmul.f32 %v1730, %v1909
    %v1927 = vmul.f32 %v1734, %v1914
    %v1928 = vmul.f32 %v1740, %v1919
    %v1929 = vmul.f32 %v1744, %v1924
    %1931 = vset.pattern.permute.xlu0 0
    %1932 = vperm.xlu0 %1931, %v1902
    %v1933 = vpop.permute.xlu0 %1932
    %1936 = vset.pattern.permute.xlu0 0
    %1937 = vperm.xlu0 %1936, %v1903
    %v1938 = vpop.permute.xlu0 %1937
    %1941 = vset.pattern.permute.xlu0 0
    %1942 = vperm.xlu0 %1941, %v1904
    %v1943 = vpop.permute.xlu0 %1942
    %1946 = vset.pattern.permute.xlu0 0
    %1947 = vperm.xlu0 %1946, %v1905
    %v1948 = vpop.permute.xlu0 %1947
    %v1950 = vadd.f32 %v1926, %v1933
    %v1951 = vadd.f32 %v1927, %v1938
    %v1952 = vadd.f32 %v1928, %v1943
    %v1953 = vadd.f32 %v1929, %v1948
    %1954 = vst [vmem:[#allocation2] sm:$0xff] %v1950
    %1955 = vst [vmem:[#allocation2 + $0x8] sm:$0xff] %v1951
    %1956 = vst [vmem:[#allocation2 + $0x10] sm:$0xff] %v1952
    %1957 = vst [vmem:[#allocation2 + $0x18] sm:$0xff] %v1953
    %1958 = vadd.xlane.f32.xlu0 %v1732
    %v1959 = vpop.xlane.xlu0 %1958
    %1960 = vadd.xlane.f32.xlu0 %v1736
    %v1961 = vpop.xlane.xlu0 %1960
    %1962 = vadd.xlane.f32.xlu0 %v1742
    %v1963 = vpop.xlane.xlu0 %1962
    %1964 = vadd.xlane.f32.xlu0 %v1746
    %v1965 = vpop.xlane.xlu0 %1964
    %v1966 = vmul.f32 %v1732, %v1732
    %v1967 = vmul.f32 %v1736, %v1736
    %v1968 = vmul.f32 %v1742, %v1742
    %v1969 = vmul.f32 %v1746, %v1746
    %1970 = vadd.xlane.f32.xlu0 %v1966
    %v1971 = vpop.xlane.xlu0 %1970
    %1972 = vadd.xlane.f32.xlu0 %v1967
    %v1973 = vpop.xlane.xlu0 %1972
    %1974 = vadd.xlane.f32.xlu0 %v1968
    %v1975 = vpop.xlane.xlu0 %1974
    %1976 = vadd.xlane.f32.xlu0 %v1969
    %v1977 = vpop.xlane.xlu0 %1976
    %v1978 = vsel %vm1760, %v1959, 0.0
    %v1979 = vsel %vm1760, %v1961, 0.0
    %v1980 = vadd.f32 %v1978, %v1979
    %v1981 = vsel %vm1760, %v1963, 0.0
    %v1982 = vadd.f32 %v1980, %v1981
    %v1983 = vsel %vm1760, %v1965, 0.0
    %v1984 = vadd.f32 %v1982, %v1983
    %1985 = vadd.xlane.f32.xlu0 %v1984
    %v1986 = vpop.xlane.xlu0 %1985
    %v1987 = vrot.slane %v1986, 4
    %v1988 = vadd.f32 %v1986, %v1987
    %v1989 = vrot.slane %v1988, 2
    %v1990 = vadd.f32 %v1988, %v1989
    %v1991 = vrot.slane %v1990, 1
    %v1992 = vadd.f32 %v1990, %v1991
    %s1993 = vtos %v1992
    %s1994 = sadd.f32 %s1993, %s1833
    %v1995 = vsel %vm1760, %v1971, 0.0
    %v1996 = vsel %vm1760, %v1973, 0.0
    %v1997 = vadd.f32 %v1995, %v1996
    %v1998 = vsel %vm1760, %v1975, 0.0
    %v1999 = vadd.f32 %v1997, %v1998
    %v2000 = vsel %vm1760, %v1977, 0.0
    %v2001 = vadd.f32 %v1999, %v2000
    %2002 = vadd.xlane.f32.xlu0 %v2001
    %v2003 = vpop.xlane.xlu0 %2002
    %v2004 = vrot.slane %v2003, 4
    %v2005 = vadd.f32 %v2003, %v2004
    %v2006 = vrot.slane %v2005, 2
    %v2007 = vadd.f32 %v2005, %v2006
    %v2008 = vrot.slane %v2007, 1
    %v2009 = vadd.f32 %v2007, %v2008
    %s2010 = vtos %v2009
    %v2011 = vmul.f32 %v1748, %v1959
    %v2012 = vmul.f32 %v1749, %v1961
    %v2013 = vmul.f32 %v1750, %v1963
    %v2014 = vmul.f32 %v1751, %v1965
    %v2015 = vsel %vm1760, %v2011, 0.0
    %v2016 = vsel %vm1760, %v2012, 0.0
    %v2017 = vadd.f32 %v2015, %v2016
    %v2018 = vsel %vm1760, %v2013, 0.0
    %v2019 = vadd.f32 %v2017, %v2018
    %v2020 = vsel %vm1760, %v2014, 0.0
    %v2021 = vadd.f32 %v2019, %v2020
    %2022 = vadd.xlane.f32.xlu0 %v2021
    %v2023 = vpop.xlane.xlu0 %2022
    %v2024 = vrot.slane %v2023, 4
    %v2025 = vadd.f32 %v2023, %v2024
    %v2026 = vrot.slane %v2025, 2
    %v2027 = vadd.f32 %v2025, %v2026
    %v2028 = vrot.slane %v2027, 1
    %v2029 = vadd.f32 %v2027, %v2028
    %s2030 = vtos %v2029
    %s2031 = smul.f32 %s2030, 2.0
    %s2032 = sadd.f32 %s2010, %s2031
    %s2033 = sadd.f32 %s2032, %s1873
    %v2034 = vrcp.pop 4096.0
    %s2035 = vtos %v2034
    %s2036 = smul.f32 %s1994, %s2035
    %v2037 = vrcp.pop 4096.0
    %s2038 = vtos %v2037
    %s2039 = smul.f32 %s2033, %s2038
    %s2040 = smul.f32 %s2036, %s2036
    %s2041 = ssub.f32 %s2039, %s2040
    %s2042 = smax.f32 %s2041, 0.0
    %s2043 = sadd.f32 %s2042, 1e-05
    %v2044 = vstv %s2043
    %v2045 = vrsqrt.pop %v2044
    %s2046 = vtos %v2045
    %v2047 = vstv %s2046
    %v2048 = vmul.f32 %v1752, %v2047
    %v2049 = vmul.f32 %v1753, %v2047
    %v2050 = vmul.f32 %v1754, %v2047
    %v2051 = vmul.f32 %v1755, %v2047
    %v2052 = vstv %s2036
    %v2053 = vsub.f32 %v1748, %v2052
    %v2054 = vsub.f32 %v1749, %v2052
    %v2055 = vsub.f32 %v1750, %v2052
    %v2056 = vsub.f32 %v1751, %v2052
    %v2057 = vmul.f32 %v2053, %v2048
    %v2058 = vmul.f32 %v2054, %v2049
    %v2059 = vmul.f32 %v2055, %v2050
    %v2060 = vmul.f32 %v2056, %v2051
    %v2061 = vadd.f32 %v1756, %v2057
    %v2062 = vadd.f32 %v1757, %v2058
    %v2063 = vadd.f32 %v1758, %v2059
    %v2064 = vadd.f32 %v1759, %v2060
    %2066 = vset.pattern.permute.xlu0 0
    %2067 = vperm.xlu0 %2066, %v2048
    %v2068 = vpop.permute.xlu0 %2067
    %2071 = vset.pattern.permute.xlu0 0
    %2072 = vperm.xlu0 %2071, %v2049
    %v2073 = vpop.permute.xlu0 %2072
    %2076 = vset.pattern.permute.xlu0 0
    %2077 = vperm.xlu0 %2076, %v2050
    %v2078 = vpop.permute.xlu0 %2077
    %2081 = vset.pattern.permute.xlu0 0
    %2082 = vperm.xlu0 %2081, %v2051
    %v2083 = vpop.permute.xlu0 %2082
    %v2085 = vmul.f32 %v1732, %v2068
    %v2086 = vmul.f32 %v1736, %v2073
    %v2087 = vmul.f32 %v1742, %v2078
    %v2088 = vmul.f32 %v1746, %v2083
    %2090 = vset.pattern.permute.xlu0 0
    %2091 = vperm.xlu0 %2090, %v2061
    %v2092 = vpop.permute.xlu0 %2091
    %2095 = vset.pattern.permute.xlu0 0
    %2096 = vperm.xlu0 %2095, %v2062
    %v2097 = vpop.permute.xlu0 %2096
    %2100 = vset.pattern.permute.xlu0 0
    %2101 = vperm.xlu0 %2100, %v2063
    %v2102 = vpop.permute.xlu0 %2101
    %2105 = vset.pattern.permute.xlu0 0
    %2106 = vperm.xlu0 %2105, %v2064
    %v2107 = vpop.permute.xlu0 %2106
    %v2109 = vadd.f32 %v2085, %v2092
    %v2110 = vadd.f32 %v2086, %v2097
    %v2111 = vadd.f32 %v2087, %v2102
    %v2112 = vadd.f32 %v2088, %v2107
    %s2113 = scalar_lea.vmem [#allocation2], 32
    %2114 = vst [vmem:[%s2113] sm:$0xff] %v2109
    %2115 = vst [vmem:[%s2113 + $0x8] sm:$0xff] %v2110
    %2116 = vst [vmem:[%s2113 + $0x10] sm:$0xff] %v2111
    %2117 = vst [vmem:[%s2113 + $0x18] sm:$0xff] %v2112
    // Predicated region
    $region30: #{tpu_custom_call.1} parent=1 // pred_check
      _
    $region31: #{tpu_custom_call.1} parent=1 // pred_check_branch
      %2119 = sbr.rel (0) target = $region33
    $region32: #{tpu_custom_call.1} parent=1 // pred_region
      %s2121 = ssub.s32 1024, 1024
      %2122 = vsyncadd [#allocation3], %s2121
      %s2123 = sshll.u32 [#allocation2], 4
      %s2124 = int_to_ptr.vmem [resolvable:$true] %s2123
      %2129 = dma.vmem_to_hbm [thread:$0]  %s2124, 1024, %s7, [#allocation3], 128, 128, 8
    $region33: #{tpu_custom_call.1} parent=1 // pred_fallthru
      _
    // Predicated region
    $region34: #{tpu_custom_call.1} parent=1 // pred_check
      _
    $region35: #{tpu_custom_call.1} parent=1 // pred_check_branch
      %2131 = sbr.rel (0) target = $region37
    $region36: #{tpu_custom_call.1} parent=1 // pred_region
      %2132 = dma.done [#allocation3], 1024
    $region37: #{tpu_custom_call.1} parent=1 // pred_fallthru
      _
    %2133 = vsyncpa [#allocation3], 1

</llo_original>
